<compile_context>
chip_gen: v7x
topology: tpu7x:2x2x1
jax: 0.10.0
libtpu: 0.0.40
codegen_flags: <defaults>
</compile_context>

<pallas_src>
import functools
import math

import jax
import jax.numpy as jnp
from jax.experimental import pallas as pl
from jax.experimental.pallas import tpu as pltpu

LN_EPS = 1e-12  # BERT layer_norm_eps default


def _layer_norm(v, g, b):
    mu = jnp.mean(v, axis=-1, keepdims=True)
    d = v - mu
    var = jnp.mean(d * d, axis=-1, keepdims=True)
    return d * jax.lax.rsqrt(var + LN_EPS) * g + b


def _pick_batch_tile(B, S, target_rows=1024):
    """Pick rows-per-grid-step.  ~1024 rows keeps v6e/v7x compute-bound on bf16
    weight streaming; v5e is roofline-balanced around 256-384 rows (still fine).
    Also try to keep >=2 batch tiles so the v7x second TensorCore has work."""
    bt = max(1, min(B, target_rows // max(S, 1)))
    while B % bt != 0:
        bt -= 1
    if B // bt < 2 and B > 1 and (B // 2) * S >= 256:
        bt = B // 2
        while B % bt != 0:
            bt -= 1
    return bt


# ----------------------------------------------------------------------------
# Fused BERT encoder (embeddings-LN fused in at layer 0).
# grid = (batch_tiles, n_layers); the activation lives in o_ref, which is VMEM
# resident across the (arbitrary) layer axis because its block index is constant.
# ----------------------------------------------------------------------------
_ENC_WEIGHT_NAMES = ("wqkv", "bqkv", "wo", "bo", "ln1_g", "ln1_b",
                     "wi", "bi", "wo2", "bo2", "ln2_g", "ln2_b")


def bert_encoder_kernel(embed_ref, mask_ref,
                        cw_ref, cb_ref, pos_ref, eg_ref, ebeta_ref,
                        wqkv_ref, bqkv_ref, wo_ref, bo_ref, g1_ref, b1_ref,
                        wi_ref, bi_ref, wo2_ref, bo2_ref, g2_ref, b2_ref,
                        o_ref, *, n_head):
    li = pl.program_id(1)
    Bt, S, H = o_ref.shape
    hd = H // n_head
    bf16 = jnp.bfloat16

    @pl.when(li == 0)
    def _():
        # comb_proj Linear + (positional + token-type-0) add + BertEmbeddings LayerNorm
        Fin = embed_ref.shape[-1]
        e = embed_ref[...].reshape(Bt * S, Fin).astype(bf16)
        y = jnp.dot(e, cw_ref[...], preferred_element_type=jnp.float32) + cb_ref[...]
        y = y.reshape(Bt, S, H) + pos_ref[...]
        o_ref[...] = _layer_norm(y, eg_ref[...], ebeta_ref[...])

    h = o_ref[...]                               # (Bt, S, H) f32, VMEM resident
    x2 = h.reshape(Bt * S, H)
    x2b = x2.astype(bf16)

    # additive key-padding mask, broadcast hoisted out of the head loop
    amask = jnp.broadcast_to(mask_ref[...], (Bt, S, S))

    # ---- multi-head self-attention ----
    # fused QKV: single full-width matmul; 1/sqrt(hd) is folded into the Q third
    # of wqkv/bqkv outside the kernel.  Weights arrive in bf16.
    qkv = jnp.dot(x2b, wqkv_ref[0], preferred_element_type=jnp.float32) + bqkv_ref[0]
    qkv = qkv.reshape(Bt, S, 3 * H)

    ctxs = []
    for hi in range(n_head):                     # static head slices of the QKV result
        q3 = qkv[:, :, hi * hd:(hi + 1) * hd].astype(bf16)
        k3 = qkv[:, :, H + hi * hd:H + (hi + 1) * hd].astype(bf16)
        v3 = qkv[:, :, 2 * H + hi * hd:2 * H + (hi + 1) * hd].astype(bf16)

        s = jnp.einsum('bqd,bkd->bqk', q3, k3,
                       preferred_element_type=jnp.float32)          # (Bt, S, S)
        s = s + amask
        s = s - jnp.max(s, axis=-1, keepdims=True)
        p = jnp.exp(s)
        p = p * pl.reciprocal(jnp.sum(p, axis=-1, keepdims=True), approx=True)

        ctxs.append(jnp.einsum('bqk,bkd->bqd', p.astype(bf16), v3,
                               preferred_element_type=jnp.float32))  # (Bt, S, hd)

    # fused output projection: one K=H matmul on the concatenated heads
    ctx = jnp.concatenate(ctxs, axis=-1).reshape(Bt * S, H)
    attn = jnp.dot(ctx.astype(bf16), wo_ref[0],
                   preferred_element_type=jnp.float32) + bo_ref[0]

    h1 = _layer_norm(x2 + attn, g1_ref[0], b1_ref[0])                # post-LN (BERT)

    # ---- feed-forward ----
    ff = jnp.dot(h1.astype(bf16), wi_ref[0],
                 preferred_element_type=jnp.float32) + bi_ref[0]
    # GELU (tanh approximation of BERT's erf gelu)
    ff = 0.5 * ff * (1.0 + jnp.tanh(0.7978845608028654 * (ff + 0.044715 * ff * ff * ff)))
    mlp = jnp.dot(ff.astype(bf16), wo2_ref[0],
                  preferred_element_type=jnp.float32) + bo2_ref[0]

    o_ref[...] = _layer_norm(h1 + mlp, g2_ref[0], b2_ref[0]).reshape(Bt, S, H)


def bert2_encoder(embed, add_mask, comb, enc, *, n_heads, bt,
                  vmem_limit_bytes=56 * 1024 * 1024):
    B, S, Fin = embed.shape
    H = comb["w"].shape[1]
    L = enc["wi"].shape[0]

    def lspec(arr):                               # per-layer stacked weight
        blk = (1,) + arr.shape[1:]
        zeros = (0,) * (arr.ndim - 1)
        return pl.BlockSpec(blk, lambda b, l, _z=zeros: (l,) + _z)

    def cspec(arr):                               # layer/batch-invariant weight
        zeros = (0,) * arr.ndim
        return pl.BlockSpec(arr.shape, lambda b, l, _z=zeros: _z)

    in_specs = [
        pl.BlockSpec((bt, S, Fin), lambda b, l: (b, 0, 0)),    # raw embeddings (bf16)
        pl.BlockSpec((bt, 1, S), lambda b, l: (b, 0, 0)),      # additive key mask
        cspec(comb["w"]), cspec(comb["b"]), cspec(comb["pos"]),
        cspec(comb["g"]), cspec(comb["beta"]),
    ] + [lspec(enc[n]) for n in _ENC_WEIGHT_NAMES]

    return pl.pallas_call(
        functools.partial(bert_encoder_kernel, n_head=n_heads),
        grid=(B // bt, L),
        in_specs=in_specs,
        out_specs=pl.BlockSpec((bt, S, H), lambda b, l: (b, 0, 0)),
        out_shape=jax.ShapeDtypeStruct((B, S, H), jnp.float32),
        compiler_params=pltpu.CompilerParams(
            dimension_semantics=("parallel", "arbitrary"),
            vmem_limit_bytes=vmem_limit_bytes),
    )(embed, add_mask, comb["w"], comb["b"], comb["pos"], comb["g"], comb["beta"],
      *[enc[n] for n in _ENC_WEIGHT_NAMES])


# ----------------------------------------------------------------------------
# Head: pooler (tanh(Linear)) + fc(H->1) + exact sigmoid, lane-dense (1, B) output
# ----------------------------------------------------------------------------
def head_kernel(h_ref, wp_ref, bp_ref, wfc_ref, bfc_ref, o_ref):
    bf16 = jnp.bfloat16
    pooled = jnp.tanh(
        jnp.dot(h_ref[...].astype(bf16), wp_ref[...].astype(bf16),
                preferred_element_type=jnp.float32) + bp_ref[...])        # (B, H)
    logits = jnp.dot(wfc_ref[...].astype(bf16), pooled.T.astype(bf16),
                     preferred_element_type=jnp.float32) + bfc_ref[...]   # (1, B)
    o_ref[...] = 1.0 / (1.0 + jnp.exp(-logits))   # exact sigmoid for final predictions


# ----------------------------------------------------------------------------
# Full forward pass
# ----------------------------------------------------------------------------
def bert2_forward(params, inputs, *, n_heads):
    test, question, tag, _, mask, interaction, _ = inputs
    B, S = interaction.shape

    # embedding lookups + concat (torch.cat([inter, test, question, tag], 2)),
    # emitted in bf16 (feeds the bf16 comb_proj matmul; halves the DMA).
    embed = jnp.concatenate([
        params["emb_inter"][interaction],
        params["emb_test"][test],
        params["emb_q"][question],
        params["emb_tag"][tag],
    ], axis=2).astype(jnp.bfloat16)                            # (B, S, 4E)

    bt = _pick_batch_tile(B, S)
    add_mask = ((1.0 - mask.astype(jnp.float32)) * -10000.0).reshape(B, 1, S)

    h = bert2_encoder(embed, add_mask, params["comb"], params["enc"],
                      n_heads=n_heads, bt=bt)

    h_cls = h[:, 0, :]                                         # pooler input (CLS position)
    out = pl.pallas_call(
        head_kernel,
        in_specs=[pl.BlockSpec(memory_space=pltpu.MemorySpace.VMEM)] * 5,
        out_specs=pl.BlockSpec(memory_space=pltpu.MemorySpace.VMEM),
        out_shape=jax.ShapeDtypeStruct((1, B), jnp.float32),
    )(h_cls, params["wp"], params["bp"], params["fc_w"], params["fc_b"])

    return out.reshape(B, 1)                                   # preds (matches .view(B, -1))


# ----------------------------------------------------------------------------
if __name__ == "__main__":
    # small synthetic config (args)
    B, S = 2, 8                      # batch, max_seq_len
    hidden = 48                      # hidden_dim (divisible by 3 and n_heads)
    n_layers, n_heads = 2, 4
    n_test, n_questions, n_tag = 5, 7, 6
    E = hidden // 3
    L, H, F = n_layers, hidden, 4 * hidden
    hd = hidden // n_heads

    keys = iter(jax.random.split(jax.random.PRNGKey(0), 64))

    def w(shape, scale=0.02):
        return jax.random.normal(next(keys), shape, jnp.float32) * scale

    # per-layer attention weights in math layout (in_features, out_features);
    # Q/K/V packed into one (H, 3H) weight with 1/sqrt(hd) pre-folded into Q.
    wq, bq = w((L, H, H)), w((L, H))
    wk, bk = w((L, H, H)), w((L, H))
    wv, bv = w((L, H, H)), w((L, H))
    wo, bo = w((L, H, H)), w((L, H))
    scale = 1.0 / math.sqrt(hd)
    enc = dict(
        wqkv=jnp.concatenate([wq * scale, wk, wv], axis=-1).astype(jnp.bfloat16),  # (L,H,3H)
        bqkv=jnp.concatenate([bq * scale, bk, bv], axis=-1).reshape(L, 1, 3 * H),  # f32
        wo=wo.astype(jnp.bfloat16),                                                # (L,H,H)
        bo=bo.reshape(L, 1, H),
        ln1_g=jnp.ones((L, 1, H), jnp.float32),
        ln1_b=jnp.zeros((L, 1, H), jnp.float32),
        wi=w((L, H, F)).astype(jnp.bfloat16),
        bi=jnp.zeros((L, 1, F), jnp.float32),
        wo2=w((L, F, H)).astype(jnp.bfloat16),
        bo2=jnp.zeros((L, 1, H), jnp.float32),
        ln2_g=jnp.ones((L, 1, H), jnp.float32),
        ln2_b=jnp.zeros((L, 1, H), jnp.float32),
    )

    wpe = w((S, H))
    tok_type = w((2, H))
    comb = dict(                                       # comb_proj + BertEmbeddings params
        w=w((4 * E, H)).astype(jnp.bfloat16),
        b=jnp.zeros((1, H), jnp.float32),
        pos=(wpe + tok_type[0][None, :])[None],        # (1,S,H): pos + token-type-0 emb
        g=jnp.ones((1, H), jnp.float32),
        beta=jnp.zeros((1, H), jnp.float32),
    )

    params = dict(
        emb_inter=w((3, E)),
        emb_test=w((n_test + 1, E)),
        emb_q=w((n_questions + 1, E)),
        emb_tag=w((n_tag + 1, E)),
        comb=comb,
        enc=enc,
        wp=w((H, H)), bp=jnp.zeros((1, H), jnp.float32),        # pooler
        fc_w=w((1, H)), fc_b=jnp.zeros((1, 1), jnp.float32),    # fc(H -> 1)
    )

    # deterministic example inputs (7-tuple: test, question, tag, _, mask, interaction, _)
    ik = iter(jax.random.split(jax.random.PRNGKey(1), 16))
    test_ids = jax.random.randint(next(ik), (B, S), 0, n_test + 1)
    question_ids = jax.random.randint(next(ik), (B, S), 0, n_questions + 1)
    tag_ids = jax.random.randint(next(ik), (B, S), 0, n_tag + 1)
    interaction_ids = jax.random.randint(next(ik), (B, S), 0, 3)
    mask = jnp.concatenate(
        [jnp.zeros((B, 2), jnp.float32), jnp.ones((B, S - 2), jnp.float32)], axis=1)
    correct = jnp.zeros((B, S), jnp.int32)        # unused slot
    extra = jnp.zeros((B, S), jnp.int32)          # unused slot

    model_input = (test_ids, question_ids, tag_ids, correct, mask, interaction_ids, extra)

    preds = bert2_forward(params, model_input, n_heads=n_heads)
    jax.block_until_ready(preds)
    assert preds.shape == (B, 1)
    assert bool(jnp.all(jnp.isfinite(preds)))
    print("KERNEL_OK")
</pallas_src>

<mosaic_0001>
module attributes {stable_mosaic.version = 11 : i64} {
  func.func @bert_encoder_kernel(%arg0: i32, %arg1: i32, %arg2: memref<2x8x64xbf16, #tpu.memory_space<vmem>>, %arg3: memref<2x1x8xf32, #tpu.memory_space<vmem>>, %arg4: memref<64x48xbf16, #tpu.memory_space<vmem>>, %arg5: memref<1x48xf32, #tpu.memory_space<vmem>>, %arg6: memref<1x8x48xf32, #tpu.memory_space<vmem>>, %arg7: memref<1x48xf32, #tpu.memory_space<vmem>>, %arg8: memref<1x48xf32, #tpu.memory_space<vmem>>, %arg9: memref<1x48x144xbf16, #tpu.memory_space<vmem>>, %arg10: memref<1x1x144xf32, #tpu.memory_space<vmem>>, %arg11: memref<1x48x48xbf16, #tpu.memory_space<vmem>>, %arg12: memref<1x1x48xf32, #tpu.memory_space<vmem>>, %arg13: memref<1x1x48xf32, #tpu.memory_space<vmem>>, %arg14: memref<1x1x48xf32, #tpu.memory_space<vmem>>, %arg15: memref<1x48x192xbf16, #tpu.memory_space<vmem>>, %arg16: memref<1x1x192xf32, #tpu.memory_space<vmem>>, %arg17: memref<1x192x48xbf16, #tpu.memory_space<vmem>>, %arg18: memref<1x1x48xf32, #tpu.memory_space<vmem>>, %arg19: memref<1x1x48xf32, #tpu.memory_space<vmem>>, %arg20: memref<1x1x48xf32, #tpu.memory_space<vmem>>, %arg21: memref<2x8x48xf32, #tpu.memory_space<vmem>>) attributes {dimension_semantics = [#tpu.dimension_semantics<parallel>, #tpu.dimension_semantics<arbitrary>], iteration_bounds = array<i64: 1, 2>, scalar_prefetch = 0 : i64, scratch_operands = 0 : i64, tpu.core_type = #tpu.core_type<tc>, window_params = [{transform_indices = @transform_0, window_bounds = array<i64: 2, 8, 64>}, {transform_indices = @transform_1, window_bounds = array<i64: 2, 1, 8>}, {pipeline_mode = #tpu.pipeline_mode<synchronous>, transform_indices = @transform_2, window_bounds = array<i64: 64, 48>}, {pipeline_mode = #tpu.pipeline_mode<synchronous>, transform_indices = @transform_3, window_bounds = array<i64: 1, 48>}, {pipeline_mode = #tpu.pipeline_mode<synchronous>, transform_indices = @transform_4, window_bounds = array<i64: 1, 8, 48>}, {pipeline_mode = #tpu.pipeline_mode<synchronous>, transform_indices = @transform_5, window_bounds = array<i64: 1, 48>}, {pipeline_mode = #tpu.pipeline_mode<synchronous>, transform_indices = @transform_6, window_bounds = array<i64: 1, 48>}, {transform_indices = @transform_7, window_bounds = array<i64: 1, 48, 144>}, {transform_indices = @transform_8, window_bounds = array<i64: 1, 1, 144>}, {transform_indices = @transform_9, window_bounds = array<i64: 1, 48, 48>}, {transform_indices = @transform_10, window_bounds = array<i64: 1, 1, 48>}, {transform_indices = @transform_11, window_bounds = array<i64: 1, 1, 48>}, {transform_indices = @transform_12, window_bounds = array<i64: 1, 1, 48>}, {transform_indices = @transform_13, window_bounds = array<i64: 1, 48, 192>}, {transform_indices = @transform_14, window_bounds = array<i64: 1, 1, 192>}, {transform_indices = @transform_15, window_bounds = array<i64: 1, 192, 48>}, {transform_indices = @transform_16, window_bounds = array<i64: 1, 1, 48>}, {transform_indices = @transform_17, window_bounds = array<i64: 1, 1, 48>}, {transform_indices = @transform_18, window_bounds = array<i64: 1, 1, 48>}, {transform_indices = @transform_19, window_bounds = array<i64: 2, 8, 48>}]} {
    %c0_i32 = arith.constant 0 : i32
    %0 = arith.cmpi eq, %arg1, %c0_i32 : i32
    %1 = arith.extui %0 : i1 to i32
    %c0_i32_0 = arith.constant 0 : i32
    %2 = arith.cmpi ne, %1, %c0_i32_0 : i32
    scf.if %2 {
      %c0_78 = arith.constant 0 : index
      %c0_79 = arith.constant 0 : index
      %c0_80 = arith.constant 0 : index
      %188 = vector.load %arg2[%c0_78, %c0_79, %c0_80] : memref<2x8x64xbf16, #tpu.memory_space<vmem>>, vector<2x8x64xbf16>
      %189 = vector.shape_cast %188 : vector<2x8x64xbf16> to vector<16x64xbf16>
      %c0_81 = arith.constant 0 : index
      %c0_82 = arith.constant 0 : index
      %190 = vector.load %arg4[%c0_81, %c0_82] : memref<64x48xbf16, #tpu.memory_space<vmem>>, vector<64x48xbf16>
      %cst_83 = arith.constant dense<0.000000e+00> : vector<16x48xf32>
      %191 = tpu.matmul %189, %190, %cst_83 {dimension_numbers = #tpu.dot_dimension_numbers<[1], [0], [0], [1], [0, 0, 1, 1], [], []>} : vector<16x64xbf16>, vector<64x48xbf16>, vector<16x48xf32> -> vector<16x48xf32>
      %c0_84 = arith.constant 0 : index
      %c0_85 = arith.constant 0 : index
      %192 = vector.load %arg5[%c0_84, %c0_85] : memref<1x48xf32, #tpu.memory_space<vmem>>, vector<1x48xf32>
      %193 = vector.broadcast %192 : vector<1x48xf32> to vector<16x48xf32>
      %194 = arith.addf %191, %193 : vector<16x48xf32>
      %195 = vector.shape_cast %194 : vector<16x48xf32> to vector<2x8x48xf32>
      %c0_86 = arith.constant 0 : index
      %c0_87 = arith.constant 0 : index
      %c0_88 = arith.constant 0 : index
      %196 = vector.load %arg6[%c0_86, %c0_87, %c0_88] : memref<1x8x48xf32, #tpu.memory_space<vmem>>, vector<1x8x48xf32>
      %197 = vector.broadcast %196 : vector<1x8x48xf32> to vector<2x8x48xf32>
      %198 = arith.addf %195, %197 : vector<2x8x48xf32>
      %c0_89 = arith.constant 0 : index
      %c0_90 = arith.constant 0 : index
      %199 = vector.load %arg7[%c0_89, %c0_90] : memref<1x48xf32, #tpu.memory_space<vmem>>, vector<1x48xf32>
      %c0_91 = arith.constant 0 : index
      %c0_92 = arith.constant 0 : index
      %200 = vector.load %arg8[%c0_91, %c0_92] : memref<1x48xf32, #tpu.memory_space<vmem>>, vector<1x48xf32>
      %cst_93 = arith.constant dense<0.000000e+00> : vector<2x8xf32>
      %201 = vector.multi_reduction <add>, %198, %cst_93 [2] : vector<2x8x48xf32> to vector<2x8xf32>
      %202 = vector.shape_cast %201 : vector<2x8xf32> to vector<2x8x1xf32>
      %cst_94 = arith.constant 4.800000e+01 : f32
      %203 = vector.broadcast %cst_94 : f32 to vector<2x8x1xf32>
      %204 = arith.divf %202, %203 : vector<2x8x1xf32>
      %205 = vector.broadcast %204 : vector<2x8x1xf32> to vector<2x8x48xf32>
      %206 = arith.subf %198, %205 : vector<2x8x48xf32>
      %207 = arith.mulf %206, %206 : vector<2x8x48xf32>
      %cst_95 = arith.constant dense<0.000000e+00> : vector<2x8xf32>
      %208 = vector.multi_reduction <add>, %207, %cst_95 [2] : vector<2x8x48xf32> to vector<2x8xf32>
      %209 = vector.shape_cast %208 : vector<2x8xf32> to vector<2x8x1xf32>
      %cst_96 = arith.constant 4.800000e+01 : f32
      %210 = vector.broadcast %cst_96 : f32 to vector<2x8x1xf32>
      %211 = arith.divf %209, %210 : vector<2x8x1xf32>
      %cst_97 = arith.constant 9.99999996E-13 : f32
      %212 = vector.broadcast %cst_97 : f32 to vector<2x8x1xf32>
      %213 = arith.addf %211, %212 : vector<2x8x1xf32>
      %214 = math.rsqrt %213 : vector<2x8x1xf32>
      %215 = vector.broadcast %214 : vector<2x8x1xf32> to vector<2x8x48xf32>
      %216 = arith.mulf %206, %215 : vector<2x8x48xf32>
      %217 = vector.shape_cast %199 : vector<1x48xf32> to vector<1x1x48xf32>
      %218 = vector.broadcast %217 : vector<1x1x48xf32> to vector<2x8x48xf32>
      %219 = arith.mulf %216, %218 : vector<2x8x48xf32>
      %220 = vector.shape_cast %200 : vector<1x48xf32> to vector<1x1x48xf32>
      %221 = vector.broadcast %220 : vector<1x1x48xf32> to vector<2x8x48xf32>
      %222 = arith.addf %219, %221 : vector<2x8x48xf32>
      %c0_98 = arith.constant 0 : index
      %c0_99 = arith.constant 0 : index
      %c0_100 = arith.constant 0 : index
      %223 = vector.load %arg21[%c0_98, %c0_99, %c0_100] : memref<2x8x48xf32, #tpu.memory_space<vmem>>, vector<2x8x48xf32>
      tpu.vector_store %arg21[%c0_98, %c0_99, %c0_100], %222 {strides = array<i32>} : memref<2x8x48xf32, #tpu.memory_space<vmem>>, vector<2x8x48xf32>,
    } else {
    }
    %c0 = arith.constant 0 : index
    %c0_1 = arith.constant 0 : index
    %c0_2 = arith.constant 0 : index
    %3 = vector.load %arg21[%c0, %c0_1, %c0_2] : memref<2x8x48xf32, #tpu.memory_space<vmem>>, vector<2x8x48xf32>
    %4 = vector.shape_cast %3 : vector<2x8x48xf32> to vector<16x48xf32>
    %5 = arith.truncf %4 : vector<16x48xf32> to vector<16x48xbf16>
    %c0_3 = arith.constant 0 : index
    %c0_4 = arith.constant 0 : index
    %c0_5 = arith.constant 0 : index
    %6 = vector.load %arg3[%c0_3, %c0_4, %c0_5] : memref<2x1x8xf32, #tpu.memory_space<vmem>>, vector<2x1x8xf32>
    %7 = vector.shape_cast %6 : vector<2x1x8xf32> to vector<2x1x8xf32>
    %8 = vector.broadcast %7 : vector<2x1x8xf32> to vector<2x8x8xf32>
    %c0_6 = arith.constant 0 : index
    %c0_7 = arith.constant 0 : index
    %c0_8 = arith.constant 0 : index
    %9 = vector.load %arg9[%c0_6, %c0_7, %c0_8] : memref<1x48x144xbf16, #tpu.memory_space<vmem>>, vector<1x48x144xbf16>
    %10 = vector.shape_cast %9 : vector<1x48x144xbf16> to vector<48x144xbf16>
    %cst = arith.constant dense<0.000000e+00> : vector<16x144xf32>
    %11 = tpu.matmul %5, %10, %cst {dimension_numbers = #tpu.dot_dimension_numbers<[1], [0], [0], [1], [0, 0, 1, 1], [], []>} : vector<16x48xbf16>, vector<48x144xbf16>, vector<16x144xf32> -> vector<16x144xf32>
    %c0_9 = arith.constant 0 : index
    %c0_10 = arith.constant 0 : index
    %c0_11 = arith.constant 0 : index
    %12 = vector.load %arg10[%c0_9, %c0_10, %c0_11] : memref<1x1x144xf32, #tpu.memory_space<vmem>>, vector<1x1x144xf32>
    %13 = vector.shape_cast %12 : vector<1x1x144xf32> to vector<1x144xf32>
    %14 = vector.broadcast %13 : vector<1x144xf32> to vector<16x144xf32>
    %15 = arith.addf %11, %14 : vector<16x144xf32>
    %16 = vector.shape_cast %15 : vector<16x144xf32> to vector<2x8x144xf32>
    %17 = vector.extract_strided_slice %16 {offsets = [0, 0, 0], sizes = [2, 8, 12], strides = [1, 1, 1]} : vector<2x8x144xf32> to vector<2x8x12xf32>
    %18 = arith.truncf %17 : vector<2x8x12xf32> to vector<2x8x12xbf16>
    %19 = vector.extract_strided_slice %16 {offsets = [0, 0, 48], sizes = [2, 8, 12], strides = [1, 1, 1]} : vector<2x8x144xf32> to vector<2x8x12xf32>
    %20 = arith.truncf %19 : vector<2x8x12xf32> to vector<2x8x12xbf16>
    %21 = vector.extract_strided_slice %16 {offsets = [0, 0, 96], sizes = [2, 8, 12], strides = [1, 1, 1]} : vector<2x8x144xf32> to vector<2x8x12xf32>
    %22 = arith.truncf %21 : vector<2x8x12xf32> to vector<2x8x12xbf16>
    "tpu.trace_start"() <{level = 10 : i32, message = "bqd,bkd->bqk"}> : () -> ()
    %cst_12 = arith.constant dense<0.000000e+00> : vector<2x8x8xf32>
    %23 = tpu.matmul %18, %20, %cst_12 {dimension_numbers = #tpu.dot_dimension_numbers<[2], [2], [1], [1], [0, 0, 0, 1, 1, 1], [0], [0]>} : vector<2x8x12xbf16>, vector<2x8x12xbf16>, vector<2x8x8xf32> -> vector<2x8x8xf32>
    "tpu.trace_stop"() : () -> ()
    %24 = arith.addf %23, %8 : vector<2x8x8xf32>
    %cst_13 = arith.constant dense<0xFF800000> : vector<2x8xf32>
    %25 = vector.multi_reduction <maximumf>, %24, %cst_13 [2] : vector<2x8x8xf32> to vector<2x8xf32>
    %26 = vector.shape_cast %25 : vector<2x8xf32> to vector<2x8x1xf32>
    %27 = vector.broadcast %26 : vector<2x8x1xf32> to vector<2x8x8xf32>
    %28 = arith.subf %24, %27 : vector<2x8x8xf32>
    %29 = math.exp %28 : vector<2x8x8xf32>
    %cst_14 = arith.constant dense<0.000000e+00> : vector<2x8xf32>
    %30 = vector.multi_reduction <add>, %29, %cst_14 [2] : vector<2x8x8xf32> to vector<2x8xf32>
    %31 = vector.shape_cast %30 : vector<2x8xf32> to vector<2x8x1xf32>
    %32 = tpu.reciprocal %31 {approx = true} : vector<2x8x1xf32> -> vector<2x8x1xf32>
    %33 = vector.broadcast %32 : vector<2x8x1xf32> to vector<2x8x8xf32>
    %34 = arith.mulf %29, %33 : vector<2x8x8xf32>
    %35 = arith.truncf %34 : vector<2x8x8xf32> to vector<2x8x8xbf16>
    "tpu.trace_start"() <{level = 10 : i32, message = "bqk,bkd->bqd"}> : () -> ()
    %cst_15 = arith.constant dense<0.000000e+00> : vector<2x8x12xf32>
    %36 = tpu.matmul %35, %22, %cst_15 {dimension_numbers = #tpu.dot_dimension_numbers<[2], [1], [1], [2], [0, 0, 0, 1, 1, 2], [0], [0]>} : vector<2x8x8xbf16>, vector<2x8x12xbf16>, vector<2x8x12xf32> -> vector<2x8x12xf32>
    "tpu.trace_stop"() : () -> ()
    %37 = vector.extract_strided_slice %16 {offsets = [0, 0, 12], sizes = [2, 8, 12], strides = [1, 1, 1]} : vector<2x8x144xf32> to vector<2x8x12xf32>
    %38 = arith.truncf %37 : vector<2x8x12xf32> to vector<2x8x12xbf16>
    %39 = vector.extract_strided_slice %16 {offsets = [0, 0, 60], sizes = [2, 8, 12], strides = [1, 1, 1]} : vector<2x8x144xf32> to vector<2x8x12xf32>
    %40 = arith.truncf %39 : vector<2x8x12xf32> to vector<2x8x12xbf16>
    %41 = vector.extract_strided_slice %16 {offsets = [0, 0, 108], sizes = [2, 8, 12], strides = [1, 1, 1]} : vector<2x8x144xf32> to vector<2x8x12xf32>
    %42 = arith.truncf %41 : vector<2x8x12xf32> to vector<2x8x12xbf16>
    "tpu.trace_start"() <{level = 10 : i32, message = "bqd,bkd->bqk"}> : () -> ()
    %cst_16 = arith.constant dense<0.000000e+00> : vector<2x8x8xf32>
    %43 = tpu.matmul %38, %40, %cst_16 {dimension_numbers = #tpu.dot_dimension_numbers<[2], [2], [1], [1], [0, 0, 0, 1, 1, 1], [0], [0]>} : vector<2x8x12xbf16>, vector<2x8x12xbf16>, vector<2x8x8xf32> -> vector<2x8x8xf32>
    "tpu.trace_stop"() : () -> ()
    %44 = arith.addf %43, %8 : vector<2x8x8xf32>
    %cst_17 = arith.constant dense<0xFF800000> : vector<2x8xf32>
    %45 = vector.multi_reduction <maximumf>, %44, %cst_17 [2] : vector<2x8x8xf32> to vector<2x8xf32>
    %46 = vector.shape_cast %45 : vector<2x8xf32> to vector<2x8x1xf32>
    %47 = vector.broadcast %46 : vector<2x8x1xf32> to vector<2x8x8xf32>
    %48 = arith.subf %44, %47 : vector<2x8x8xf32>
    %49 = math.exp %48 : vector<2x8x8xf32>
    %cst_18 = arith.constant dense<0.000000e+00> : vector<2x8xf32>
    %50 = vector.multi_reduction <add>, %49, %cst_18 [2] : vector<2x8x8xf32> to vector<2x8xf32>
    %51 = vector.shape_cast %50 : vector<2x8xf32> to vector<2x8x1xf32>
    %52 = tpu.reciprocal %51 {approx = true} : vector<2x8x1xf32> -> vector<2x8x1xf32>
    %53 = vector.broadcast %52 : vector<2x8x1xf32> to vector<2x8x8xf32>
    %54 = arith.mulf %49, %53 : vector<2x8x8xf32>
    %55 = arith.truncf %54 : vector<2x8x8xf32> to vector<2x8x8xbf16>
    "tpu.trace_start"() <{level = 10 : i32, message = "bqk,bkd->bqd"}> : () -> ()
    %cst_19 = arith.constant dense<0.000000e+00> : vector<2x8x12xf32>
    %56 = tpu.matmul %55, %42, %cst_19 {dimension_numbers = #tpu.dot_dimension_numbers<[2], [1], [1], [2], [0, 0, 0, 1, 1, 2], [0], [0]>} : vector<2x8x8xbf16>, vector<2x8x12xbf16>, vector<2x8x12xf32> -> vector<2x8x12xf32>
    "tpu.trace_stop"() : () -> ()
    %57 = vector.extract_strided_slice %16 {offsets = [0, 0, 24], sizes = [2, 8, 12], strides = [1, 1, 1]} : vector<2x8x144xf32> to vector<2x8x12xf32>
    %58 = arith.truncf %57 : vector<2x8x12xf32> to vector<2x8x12xbf16>
    %59 = vector.extract_strided_slice %16 {offsets = [0, 0, 72], sizes = [2, 8, 12], strides = [1, 1, 1]} : vector<2x8x144xf32> to vector<2x8x12xf32>
    %60 = arith.truncf %59 : vector<2x8x12xf32> to vector<2x8x12xbf16>
    %61 = vector.extract_strided_slice %16 {offsets = [0, 0, 120], sizes = [2, 8, 12], strides = [1, 1, 1]} : vector<2x8x144xf32> to vector<2x8x12xf32>
    %62 = arith.truncf %61 : vector<2x8x12xf32> to vector<2x8x12xbf16>
    "tpu.trace_start"() <{level = 10 : i32, message = "bqd,bkd->bqk"}> : () -> ()
    %cst_20 = arith.constant dense<0.000000e+00> : vector<2x8x8xf32>
    %63 = tpu.matmul %58, %60, %cst_20 {dimension_numbers = #tpu.dot_dimension_numbers<[2], [2], [1], [1], [0, 0, 0, 1, 1, 1], [0], [0]>} : vector<2x8x12xbf16>, vector<2x8x12xbf16>, vector<2x8x8xf32> -> vector<2x8x8xf32>
    "tpu.trace_stop"() : () -> ()
    %64 = arith.addf %63, %8 : vector<2x8x8xf32>
    %cst_21 = arith.constant dense<0xFF800000> : vector<2x8xf32>
    %65 = vector.multi_reduction <maximumf>, %64, %cst_21 [2] : vector<2x8x8xf32> to vector<2x8xf32>
    %66 = vector.shape_cast %65 : vector<2x8xf32> to vector<2x8x1xf32>
    %67 = vector.broadcast %66 : vector<2x8x1xf32> to vector<2x8x8xf32>
    %68 = arith.subf %64, %67 : vector<2x8x8xf32>
    %69 = math.exp %68 : vector<2x8x8xf32>
    %cst_22 = arith.constant dense<0.000000e+00> : vector<2x8xf32>
    %70 = vector.multi_reduction <add>, %69, %cst_22 [2] : vector<2x8x8xf32> to vector<2x8xf32>
    %71 = vector.shape_cast %70 : vector<2x8xf32> to vector<2x8x1xf32>
    %72 = tpu.reciprocal %71 {approx = true} : vector<2x8x1xf32> -> vector<2x8x1xf32>
    %73 = vector.broadcast %72 : vector<2x8x1xf32> to vector<2x8x8xf32>
    %74 = arith.mulf %69, %73 : vector<2x8x8xf32>
    %75 = arith.truncf %74 : vector<2x8x8xf32> to vector<2x8x8xbf16>
    "tpu.trace_start"() <{level = 10 : i32, message = "bqk,bkd->bqd"}> : () -> ()
    %cst_23 = arith.constant dense<0.000000e+00> : vector<2x8x12xf32>
    %76 = tpu.matmul %75, %62, %cst_23 {dimension_numbers = #tpu.dot_dimension_numbers<[2], [1], [1], [2], [0, 0, 0, 1, 1, 2], [0], [0]>} : vector<2x8x8xbf16>, vector<2x8x12xbf16>, vector<2x8x12xf32> -> vector<2x8x12xf32>
    "tpu.trace_stop"() : () -> ()
    %77 = vector.extract_strided_slice %16 {offsets = [0, 0, 36], sizes = [2, 8, 12], strides = [1, 1, 1]} : vector<2x8x144xf32> to vector<2x8x12xf32>
    %78 = arith.truncf %77 : vector<2x8x12xf32> to vector<2x8x12xbf16>
    %79 = vector.extract_strided_slice %16 {offsets = [0, 0, 84], sizes = [2, 8, 12], strides = [1, 1, 1]} : vector<2x8x144xf32> to vector<2x8x12xf32>
    %80 = arith.truncf %79 : vector<2x8x12xf32> to vector<2x8x12xbf16>
    %81 = vector.extract_strided_slice %16 {offsets = [0, 0, 132], sizes = [2, 8, 12], strides = [1, 1, 1]} : vector<2x8x144xf32> to vector<2x8x12xf32>
    %82 = arith.truncf %81 : vector<2x8x12xf32> to vector<2x8x12xbf16>
    "tpu.trace_start"() <{level = 10 : i32, message = "bqd,bkd->bqk"}> : () -> ()
    %cst_24 = arith.constant dense<0.000000e+00> : vector<2x8x8xf32>
    %83 = tpu.matmul %78, %80, %cst_24 {dimension_numbers = #tpu.dot_dimension_numbers<[2], [2], [1], [1], [0, 0, 0, 1, 1, 1], [0], [0]>} : vector<2x8x12xbf16>, vector<2x8x12xbf16>, vector<2x8x8xf32> -> vector<2x8x8xf32>
    "tpu.trace_stop"() : () -> ()
    %84 = arith.addf %83, %8 : vector<2x8x8xf32>
    %cst_25 = arith.constant dense<0xFF800000> : vector<2x8xf32>
    %85 = vector.multi_reduction <maximumf>, %84, %cst_25 [2] : vector<2x8x8xf32> to vector<2x8xf32>
    %86 = vector.shape_cast %85 : vector<2x8xf32> to vector<2x8x1xf32>
    %87 = vector.broadcast %86 : vector<2x8x1xf32> to vector<2x8x8xf32>
    %88 = arith.subf %84, %87 : vector<2x8x8xf32>
    %89 = math.exp %88 : vector<2x8x8xf32>
    %cst_26 = arith.constant dense<0.000000e+00> : vector<2x8xf32>
    %90 = vector.multi_reduction <add>, %89, %cst_26 [2] : vector<2x8x8xf32> to vector<2x8xf32>
    %91 = vector.shape_cast %90 : vector<2x8xf32> to vector<2x8x1xf32>
    %92 = tpu.reciprocal %91 {approx = true} : vector<2x8x1xf32> -> vector<2x8x1xf32>
    %93 = vector.broadcast %92 : vector<2x8x1xf32> to vector<2x8x8xf32>
    %94 = arith.mulf %89, %93 : vector<2x8x8xf32>
    %95 = arith.truncf %94 : vector<2x8x8xf32> to vector<2x8x8xbf16>
    "tpu.trace_start"() <{level = 10 : i32, message = "bqk,bkd->bqd"}> : () -> ()
    %cst_27 = arith.constant dense<0.000000e+00> : vector<2x8x12xf32>
    %96 = tpu.matmul %95, %82, %cst_27 {dimension_numbers = #tpu.dot_dimension_numbers<[2], [1], [1], [2], [0, 0, 0, 1, 1, 2], [0], [0]>} : vector<2x8x8xbf16>, vector<2x8x12xbf16>, vector<2x8x12xf32> -> vector<2x8x12xf32>
    "tpu.trace_stop"() : () -> ()
    %97 = tpu.concatenate %36, %56, %76, %96 in 2 : vector<2x8x12xf32>, vector<2x8x12xf32>, vector<2x8x12xf32>, vector<2x8x12xf32> -> vector<2x8x48xf32>
    %98 = vector.shape_cast %97 : vector<2x8x48xf32> to vector<16x48xf32>
    %99 = arith.truncf %98 : vector<16x48xf32> to vector<16x48xbf16>
    %c0_28 = arith.constant 0 : index
    %c0_29 = arith.constant 0 : index
    %c0_30 = arith.constant 0 : index
    %100 = vector.load %arg11[%c0_28, %c0_29, %c0_30] : memref<1x48x48xbf16, #tpu.memory_space<vmem>>, vector<1x48x48xbf16>
    %101 = vector.shape_cast %100 : vector<1x48x48xbf16> to vector<48x48xbf16>
    %cst_31 = arith.constant dense<0.000000e+00> : vector<16x48xf32>
    %102 = tpu.matmul %99, %101, %cst_31 {dimension_numbers = #tpu.dot_dimension_numbers<[1], [0], [0], [1], [0, 0, 1, 1], [], []>} : vector<16x48xbf16>, vector<48x48xbf16>, vector<16x48xf32> -> vector<16x48xf32>
    %c0_32 = arith.constant 0 : index
    %c0_33 = arith.constant 0 : index
    %c0_34 = arith.constant 0 : index
    %103 = vector.load %arg12[%c0_32, %c0_33, %c0_34] : memref<1x1x48xf32, #tpu.memory_space<vmem>>, vector<1x1x48xf32>
    %104 = vector.shape_cast %103 : vector<1x1x48xf32> to vector<1x48xf32>
    %105 = vector.broadcast %104 : vector<1x48xf32> to vector<16x48xf32>
    %106 = arith.addf %102, %105 : vector<16x48xf32>
    %107 = arith.addf %4, %106 : vector<16x48xf32>
    %c0_35 = arith.constant 0 : index
    %c0_36 = arith.constant 0 : index
    %c0_37 = arith.constant 0 : index
    %108 = vector.load %arg13[%c0_35, %c0_36, %c0_37] : memref<1x1x48xf32, #tpu.memory_space<vmem>>, vector<1x1x48xf32>
    %109 = vector.shape_cast %108 : vector<1x1x48xf32> to vector<1x48xf32>
    %c0_38 = arith.constant 0 : index
    %c0_39 = arith.constant 0 : index
    %c0_40 = arith.constant 0 : index
    %110 = vector.load %arg14[%c0_38, %c0_39, %c0_40] : memref<1x1x48xf32, #tpu.memory_space<vmem>>, vector<1x1x48xf32>
    %111 = vector.shape_cast %110 : vector<1x1x48xf32> to vector<1x48xf32>
    %cst_41 = arith.constant dense<0.000000e+00> : vector<16xf32>
    %112 = vector.multi_reduction <add>, %107, %cst_41 [1] : vector<16x48xf32> to vector<16xf32>
    %113 = vector.shape_cast %112 : vector<16xf32> to vector<16x1xf32>
    %cst_42 = arith.constant 4.800000e+01 : f32
    %114 = vector.broadcast %cst_42 : f32 to vector<16x1xf32>
    %115 = arith.divf %113, %114 : vector<16x1xf32>
    %116 = vector.broadcast %115 : vector<16x1xf32> to vector<16x48xf32>
    %117 = arith.subf %107, %116 : vector<16x48xf32>
    %118 = arith.mulf %117, %117 : vector<16x48xf32>
    %cst_43 = arith.constant dense<0.000000e+00> : vector<16xf32>
    %119 = vector.multi_reduction <add>, %118, %cst_43 [1] : vector<16x48xf32> to vector<16xf32>
    %120 = vector.shape_cast %119 : vector<16xf32> to vector<16x1xf32>
    %cst_44 = arith.constant 4.800000e+01 : f32
    %121 = vector.broadcast %cst_44 : f32 to vector<16x1xf32>
    %122 = arith.divf %120, %121 : vector<16x1xf32>
    %cst_45 = arith.constant 9.99999996E-13 : f32
    %123 = vector.broadcast %cst_45 : f32 to vector<16x1xf32>
    %124 = arith.addf %122, %123 : vector<16x1xf32>
    %125 = math.rsqrt %124 : vector<16x1xf32>
    %126 = vector.broadcast %125 : vector<16x1xf32> to vector<16x48xf32>
    %127 = arith.mulf %117, %126 : vector<16x48xf32>
    %128 = vector.broadcast %109 : vector<1x48xf32> to vector<16x48xf32>
    %129 = arith.mulf %127, %128 : vector<16x48xf32>
    %130 = vector.broadcast %111 : vector<1x48xf32> to vector<16x48xf32>
    %131 = arith.addf %129, %130 : vector<16x48xf32>
    %132 = arith.truncf %131 : vector<16x48xf32> to vector<16x48xbf16>
    %c0_46 = arith.constant 0 : index
    %c0_47 = arith.constant 0 : index
    %c0_48 = arith.constant 0 : index
    %133 = vector.load %arg15[%c0_46, %c0_47, %c0_48] : memref<1x48x192xbf16, #tpu.memory_space<vmem>>, vector<1x48x192xbf16>
    %134 = vector.shape_cast %133 : vector<1x48x192xbf16> to vector<48x192xbf16>
    %cst_49 = arith.constant dense<0.000000e+00> : vector<16x192xf32>
    %135 = tpu.matmul %132, %134, %cst_49 {dimension_numbers = #tpu.dot_dimension_numbers<[1], [0], [0], [1], [0, 0, 1, 1], [], []>} : vector<16x48xbf16>, vector<48x192xbf16>, vector<16x192xf32> -> vector<16x192xf32>
    %c0_50 = arith.constant 0 : index
    %c0_51 = arith.constant 0 : index
    %c0_52 = arith.constant 0 : index
    %136 = vector.load %arg16[%c0_50, %c0_51, %c0_52] : memref<1x1x192xf32, #tpu.memory_space<vmem>>, vector<1x1x192xf32>
    %137 = vector.shape_cast %136 : vector<1x1x192xf32> to vector<1x192xf32>
    %138 = vector.broadcast %137 : vector<1x192xf32> to vector<16x192xf32>
    %139 = arith.addf %135, %138 : vector<16x192xf32>
    %cst_53 = arith.constant 5.000000e-01 : f32
    %140 = vector.broadcast %cst_53 : f32 to vector<16x192xf32>
    %141 = arith.mulf %140, %139 : vector<16x192xf32>
    %cst_54 = arith.constant 4.471500e-02 : f32
    %142 = vector.broadcast %cst_54 : f32 to vector<16x192xf32>
    %143 = arith.mulf %142, %139 : vector<16x192xf32>
    %144 = arith.mulf %143, %139 : vector<16x192xf32>
    %145 = arith.mulf %144, %139 : vector<16x192xf32>
    %146 = arith.addf %139, %145 : vector<16x192xf32>
    %cst_55 = arith.constant 0.797884583 : f32
    %147 = vector.broadcast %cst_55 : f32 to vector<16x192xf32>
    %148 = arith.mulf %147, %146 : vector<16x192xf32>
    %149 = math.tanh %148 : vector<16x192xf32>
    %cst_56 = arith.constant 1.000000e+00 : f32
    %150 = vector.broadcast %cst_56 : f32 to vector<16x192xf32>
    %151 = arith.addf %150, %149 : vector<16x192xf32>
    %152 = arith.mulf %141, %151 : vector<16x192xf32>
    %153 = arith.truncf %152 : vector<16x192xf32> to vector<16x192xbf16>
    %c0_57 = arith.constant 0 : index
    %c0_58 = arith.constant 0 : index
    %c0_59 = arith.constant 0 : index
    %154 = vector.load %arg17[%c0_57, %c0_58, %c0_59] : memref<1x192x48xbf16, #tpu.memory_space<vmem>>, vector<1x192x48xbf16>
    %155 = vector.shape_cast %154 : vector<1x192x48xbf16> to vector<192x48xbf16>
    %cst_60 = arith.constant dense<0.000000e+00> : vector<16x48xf32>
    %156 = tpu.matmul %153, %155, %cst_60 {dimension_numbers = #tpu.dot_dimension_numbers<[1], [0], [0], [1], [0, 0, 1, 1], [], []>} : vector<16x192xbf16>, vector<192x48xbf16>, vector<16x48xf32> -> vector<16x48xf32>
    %c0_61 = arith.constant 0 : index
    %c0_62 = arith.constant 0 : index
    %c0_63 = arith.constant 0 : index
    %157 = vector.load %arg18[%c0_61, %c0_62, %c0_63] : memref<1x1x48xf32, #tpu.memory_space<vmem>>, vector<1x1x48xf32>
    %158 = vector.shape_cast %157 : vector<1x1x48xf32> to vector<1x48xf32>
    %159 = vector.broadcast %158 : vector<1x48xf32> to vector<16x48xf32>
    %160 = arith.addf %156, %159 : vector<16x48xf32>
    %161 = arith.addf %131, %160 : vector<16x48xf32>
    %c0_64 = arith.constant 0 : index
    %c0_65 = arith.constant 0 : index
    %c0_66 = arith.constant 0 : index
    %162 = vector.load %arg19[%c0_64, %c0_65, %c0_66] : memref<1x1x48xf32, #tpu.memory_space<vmem>>, vector<1x1x48xf32>
    %163 = vector.shape_cast %162 : vector<1x1x48xf32> to vector<1x48xf32>
    %c0_67 = arith.constant 0 : index
    %c0_68 = arith.constant 0 : index
    %c0_69 = arith.constant 0 : index
    %164 = vector.load %arg20[%c0_67, %c0_68, %c0_69] : memref<1x1x48xf32, #tpu.memory_space<vmem>>, vector<1x1x48xf32>
    %165 = vector.shape_cast %164 : vector<1x1x48xf32> to vector<1x48xf32>
    %cst_70 = arith.constant dense<0.000000e+00> : vector<16xf32>
    %166 = vector.multi_reduction <add>, %161, %cst_70 [1] : vector<16x48xf32> to vector<16xf32>
    %167 = vector.shape_cast %166 : vector<16xf32> to vector<16x1xf32>
    %cst_71 = arith.constant 4.800000e+01 : f32
    %168 = vector.broadcast %cst_71 : f32 to vector<16x1xf32>
    %169 = arith.divf %167, %168 : vector<16x1xf32>
    %170 = vector.broadcast %169 : vector<16x1xf32> to vector<16x48xf32>
    %171 = arith.subf %161, %170 : vector<16x48xf32>
    %172 = arith.mulf %171, %171 : vector<16x48xf32>
    %cst_72 = arith.constant dense<0.000000e+00> : vector<16xf32>
    %173 = vector.multi_reduction <add>, %172, %cst_72 [1] : vector<16x48xf32> to vector<16xf32>
    %174 = vector.shape_cast %173 : vector<16xf32> to vector<16x1xf32>
    %cst_73 = arith.constant 4.800000e+01 : f32
    %175 = vector.broadcast %cst_73 : f32 to vector<16x1xf32>
    %176 = arith.divf %174, %175 : vector<16x1xf32>
    %cst_74 = arith.constant 9.99999996E-13 : f32
    %177 = vector.broadcast %cst_74 : f32 to vector<16x1xf32>
    %178 = arith.addf %176, %177 : vector<16x1xf32>
    %179 = math.rsqrt %178 : vector<16x1xf32>
    %180 = vector.broadcast %179 : vector<16x1xf32> to vector<16x48xf32>
    %181 = arith.mulf %171, %180 : vector<16x48xf32>
    %182 = vector.broadcast %163 : vector<1x48xf32> to vector<16x48xf32>
    %183 = arith.mulf %181, %182 : vector<16x48xf32>
    %184 = vector.broadcast %165 : vector<1x48xf32> to vector<16x48xf32>
    %185 = arith.addf %183, %184 : vector<16x48xf32>
    %186 = vector.shape_cast %185 : vector<16x48xf32> to vector<2x8x48xf32>
    %c0_75 = arith.constant 0 : index
    %c0_76 = arith.constant 0 : index
    %c0_77 = arith.constant 0 : index
    %187 = vector.load %arg21[%c0_75, %c0_76, %c0_77] : memref<2x8x48xf32, #tpu.memory_space<vmem>>, vector<2x8x48xf32>
    tpu.vector_store %arg21[%c0_75, %c0_76, %c0_77], %186 {strides = array<i32>} : memref<2x8x48xf32, #tpu.memory_space<vmem>>, vector<2x8x48xf32>,
    return
  }
  func.func @transform_0(%arg0: i32, %arg1: i32) -> (i32, i32, i32) {
    %c0_i32 = arith.constant 0 : i32
    %c0_i32_0 = arith.constant 0 : i32
    %c0_i32_1 = arith.constant 0 : i32
    return %arg0, %c0_i32, %c0_i32_0 : i32, i32, i32
  }
  func.func @transform_1(%arg0: i32, %arg1: i32) -> (i32, i32, i32) {
    %c0_i32 = arith.constant 0 : i32
    %c0_i32_0 = arith.constant 0 : i32
    %c0_i32_1 = arith.constant 0 : i32
    return %arg0, %c0_i32, %c0_i32_0 : i32, i32, i32
  }
  func.func @transform_2(%arg0: i32, %arg1: i32) -> (i32, i32) {
    %c0_i32 = arith.constant 0 : i32
    %c0_i32_0 = arith.constant 0 : i32
    %c0_i32_1 = arith.constant 0 : i32
    return %c0_i32, %c0_i32_0 : i32, i32
  }
  func.func @transform_3(%arg0: i32, %arg1: i32) -> (i32, i32) {
    %c0_i32 = arith.constant 0 : i32
    %c0_i32_0 = arith.constant 0 : i32
    %c0_i32_1 = arith.constant 0 : i32
    return %c0_i32, %c0_i32_0 : i32, i32
  }
  func.func @transform_4(%arg0: i32, %arg1: i32) -> (i32, i32, i32) {
    %c0_i32 = arith.constant 0 : i32
    %c0_i32_0 = arith.constant 0 : i32
    %c0_i32_1 = arith.constant 0 : i32
    %c0_i32_2 = arith.constant 0 : i32
    return %c0_i32, %c0_i32_0, %c0_i32_1 : i32, i32, i32
  }
  func.func @transform_5(%arg0: i32, %arg1: i32) -> (i32, i32) {
    %c0_i32 = arith.constant 0 : i32
    %c0_i32_0 = arith.constant 0 : i32
    %c0_i32_1 = arith.constant 0 : i32
    return %c0_i32, %c0_i32_0 : i32, i32
  }
  func.func @transform_6(%arg0: i32, %arg1: i32) -> (i32, i32) {
    %c0_i32 = arith.constant 0 : i32
    %c0_i32_0 = arith.constant 0 : i32
    %c0_i32_1 = arith.constant 0 : i32
    return %c0_i32, %c0_i32_0 : i32, i32
  }
  func.func @transform_7(%arg0: i32, %arg1: i32) -> (i32, i32, i32) {
    %c0_i32 = arith.constant 0 : i32
    %c0_i32_0 = arith.constant 0 : i32
    %c0_i32_1 = arith.constant 0 : i32
    return %arg1, %c0_i32, %c0_i32_0 : i32, i32, i32
  }
  func.func @transform_8(%arg0: i32, %arg1: i32) -> (i32, i32, i32) {
    %c0_i32 = arith.constant 0 : i32
    %c0_i32_0 = arith.constant 0 : i32
    %c0_i32_1 = arith.constant 0 : i32
    return %arg1, %c0_i32, %c0_i32_0 : i32, i32, i32
  }
  func.func @transform_9(%arg0: i32, %arg1: i32) -> (i32, i32, i32) {
    %c0_i32 = arith.constant 0 : i32
    %c0_i32_0 = arith.constant 0 : i32
    %c0_i32_1 = arith.constant 0 : i32
    return %arg1, %c0_i32, %c0_i32_0 : i32, i32, i32
  }
  func.func @transform_10(%arg0: i32, %arg1: i32) -> (i32, i32, i32) {
    %c0_i32 = arith.constant 0 : i32
    %c0_i32_0 = arith.constant 0 : i32
    %c0_i32_1 = arith.constant 0 : i32
    return %arg1, %c0_i32, %c0_i32_0 : i32, i32, i32
  }
  func.func @transform_11(%arg0: i32, %arg1: i32) -> (i32, i32, i32) {
    %c0_i32 = arith.constant 0 : i32
    %c0_i32_0 = arith.constant 0 : i32
    %c0_i32_1 = arith.constant 0 : i32
    return %arg1, %c0_i32, %c0_i32_0 : i32, i32, i32
  }
  func.func @transform_12(%arg0: i32, %arg1: i32) -> (i32, i32, i32) {
    %c0_i32 = arith.constant 0 : i32
    %c0_i32_0 = arith.constant 0 : i32
    %c0_i32_1 = arith.constant 0 : i32
    return %arg1, %c0_i32, %c0_i32_0 : i32, i32, i32
  }
  func.func @transform_13(%arg0: i32, %arg1: i32) -> (i32, i32, i32) {
    %c0_i32 = arith.constant 0 : i32
    %c0_i32_0 = arith.constant 0 : i32
    %c0_i32_1 = arith.constant 0 : i32
    return %arg1, %c0_i32, %c0_i32_0 : i32, i32, i32
  }
  func.func @transform_14(%arg0: i32, %arg1: i32) -> (i32, i32, i32) {
    %c0_i32 = arith.constant 0 : i32
    %c0_i32_0 = arith.constant 0 : i32
    %c0_i32_1 = arith.constant 0 : i32
    return %arg1, %c0_i32, %c0_i32_0 : i32, i32, i32
  }
  func.func @transform_15(%arg0: i32, %arg1: i32) -> (i32, i32, i32) {
    %c0_i32 = arith.constant 0 : i32
    %c0_i32_0 = arith.constant 0 : i32
    %c0_i32_1 = arith.constant 0 : i32
    return %arg1, %c0_i32, %c0_i32_0 : i32, i32, i32
  }
  func.func @transform_16(%arg0: i32, %arg1: i32) -> (i32, i32, i32) {
    %c0_i32 = arith.constant 0 : i32
    %c0_i32_0 = arith.constant 0 : i32
    %c0_i32_1 = arith.constant 0 : i32
    return %arg1, %c0_i32, %c0_i32_0 : i32, i32, i32
  }
  func.func @transform_17(%arg0: i32, %arg1: i32) -> (i32, i32, i32) {
    %c0_i32 = arith.constant 0 : i32
    %c0_i32_0 = arith.constant 0 : i32
    %c0_i32_1 = arith.constant 0 : i32
    return %arg1, %c0_i32, %c0_i32_0 : i32, i32, i32
  }
  func.func @transform_18(%arg0: i32, %arg1: i32) -> (i32, i32, i32) {
    %c0_i32 = arith.constant 0 : i32
    %c0_i32_0 = arith.constant 0 : i32
    %c0_i32_1 = arith.constant 0 : i32
    return %arg1, %c0_i32, %c0_i32_0 : i32, i32, i32
  }
  func.func @transform_19(%arg0: i32, %arg1: i32) -> (i32, i32, i32) {
    %c0_i32 = arith.constant 0 : i32
    %c0_i32_0 = arith.constant 0 : i32
    %c0_i32_1 = arith.constant 0 : i32
    return %arg0, %c0_i32, %c0_i32_0 : i32, i32, i32
  }
}

</mosaic_0001>

<llo_original>
// kernel: tpu_custom_call.1
$region0: #{tpu_custom_call.1}
  #allocation0 [shape = 'u32[]', space=smem, size = 0x4, offset = 0x4, fixed_abs, tag = 'smem constant byte address 0x4 - core index']
  #allocation1 [shape = 'u32[144,128]{1,0:T(1,128)}', space=vmem, size = 0x12000, scoped, tag = 'internal scratch']
  %s0 = inlined_call_operand.vmem [shape: bf16[2,8,64], index: 0, kind: input, shape index: {}]
  %s1 = inlined_call_operand.vmem [shape: f32[2,1,8], index: 1, kind: input, shape index: {}]
  %s2 = inlined_call_operand.vmem [shape: bf16[64,48], index: 2, kind: input, shape index: {}]
  %s3 = inlined_call_operand.vmem [shape: f32[1,48], index: 3, kind: input, shape index: {}]
  %s4 = inlined_call_operand.vmem [shape: f32[1,8,48], index: 4, kind: input, shape index: {}]
  %s5 = inlined_call_operand.vmem [shape: f32[1,48], index: 5, kind: input, shape index: {}]
  %s6 = inlined_call_operand.vmem [shape: f32[1,48], index: 6, kind: input, shape index: {}]
  %s7 = inlined_call_operand.vmem [shape: bf16[2,48,144], index: 7, kind: input, shape index: {}]
  %s8 = inlined_call_operand.vmem [shape: f32[2,1,144], index: 8, kind: input, shape index: {}]
  %s9 = inlined_call_operand.vmem [shape: bf16[2,48,48], index: 9, kind: input, shape index: {}]
  %s10 = inlined_call_operand.vmem [shape: f32[2,1,48], index: 10, kind: input, shape index: {}]
  %s11 = inlined_call_operand.vmem [shape: f32[2,1,48], index: 11, kind: input, shape index: {}]
  %s12 = inlined_call_operand.vmem [shape: f32[2,1,48], index: 12, kind: input, shape index: {}]
  %s13 = inlined_call_operand.vmem [shape: bf16[2,48,192], index: 13, kind: input, shape index: {}]
  %s14 = inlined_call_operand.vmem [shape: f32[2,1,192], index: 14, kind: input, shape index: {}]
  %s15 = inlined_call_operand.vmem [shape: bf16[2,192,48], index: 15, kind: input, shape index: {}]
  %s16 = inlined_call_operand.vmem [shape: f32[2,1,48], index: 16, kind: input, shape index: {}]
  %s17 = inlined_call_operand.vmem [shape: f32[2,1,48], index: 17, kind: input, shape index: {}]
  %s18 = inlined_call_operand.vmem [shape: f32[2,1,48], index: 18, kind: input, shape index: {}]
  %s19 = inlined_call_operand.hbm [shape: f32[2,8,48], index: 19, kind: output, shape index: {}]
  %s20 = sld [smem:[#allocation0]]
  $region113: #{tpu_custom_call.1} parent=0
    _
  %s22 = ssub.s32 1, %s20
  %s23 = scalar_select 0, %s22, %s20
  $region1: #{tpu_custom_call.1} parent=0
    #allocation2 [shape = 'u8[8192]{0}', space=vmem, size = 0x2000, scoped, tag = 'output window, operand 0, single buffered']
    #allocation3 [shape = 's32[2]{0}', space=sflag, size = 0x8, scoped, tag = 'scoped memory for tpu_custom_call.1']
    %24 = vsyncpa [#allocation3], 0
    loop: start=0, step=1, limit=4
    $region2: #{tpu_custom_call.1} parent=1 // loop_pre_header
      _
    $region3: #{tpu_custom_call.1} parent=1 // loop_header
      %s26 = sphi 0, %s30
      %p27 = scmp.ge.s32.totalorder %s26, 4
      %s33 = sphi 0, %s45
      %s34 = sphi 0, %s41
      %s35 = sphi 0, %s33
      %s36 = sphi 0, %s34
      %s37 = sphi 0, %s35
      %s38 = sphi 0, %s36
      %s48 = sphi 0, %s50
      %s51 = sphi 0, %s48
      %s52 = sphi 0, %s51
      %s68 = sphi 0, %s52
      %s74 = sphi 0, %s76
      %s77 = sphi 0, %s74
      %s78 = sphi 0, %s77
      %s94 = sphi 0, %s78
      %s98 = sphi 0, %s98
      %s100 = sphi 0, %s98
      %s101 = sphi 0, %s100
      %s115 = sphi 0, %s101
      %s119 = sphi 0, %s119
      %s121 = sphi 0, %s119
      %s122 = sphi 0, %s121
      %s136 = sphi 0, %s122
      %s140 = sphi 0, %s140
      %s142 = sphi 0, %s140
      %s143 = sphi 0, %s142
      %s157 = sphi 0, %s143
      %s161 = sphi 0, %s161
      %s163 = sphi 0, %s161
      %s164 = sphi 0, %s163
      %s178 = sphi 0, %s164
      %s182 = sphi 0, %s182
      %s184 = sphi 0, %s182
      %s185 = sphi 0, %s184
      %s199 = sphi 0, %s185
      %s205 = sphi 0, %s207
      %s208 = sphi 0, %s205
      %s209 = sphi 0, %s208
      %s225 = sphi 0, %s209
      %s231 = sphi 0, %s233
      %s234 = sphi 0, %s231
      %s235 = sphi 0, %s234
      %s251 = sphi 0, %s235
      %s257 = sphi 0, %s259
      %s260 = sphi 0, %s257
      %s261 = sphi 0, %s260
      %s277 = sphi 0, %s261
      %s283 = sphi 0, %s285
      %s286 = sphi 0, %s283
      %s287 = sphi 0, %s286
      %s303 = sphi 0, %s287
      %s309 = sphi 0, %s311
      %s312 = sphi 0, %s309
      %s313 = sphi 0, %s312
      %s329 = sphi 0, %s313
      %s335 = sphi 0, %s337
      %s338 = sphi 0, %s335
      %s339 = sphi 0, %s338
      %s355 = sphi 0, %s339
      %s361 = sphi 0, %s363
      %s364 = sphi 0, %s361
      %s365 = sphi 0, %s364
      %s381 = sphi 0, %s365
      %s387 = sphi 0, %s389
      %s390 = sphi 0, %s387
      %s391 = sphi 0, %s390
      %s407 = sphi 0, %s391
      %s413 = sphi 0, %s415
      %s416 = sphi 0, %s413
      %s417 = sphi 0, %s416
      %s433 = sphi 0, %s417
      %s439 = sphi 0, %s441
      %s442 = sphi 0, %s439
      %s443 = sphi 0, %s442
      %s459 = sphi 0, %s443
      %s465 = sphi 0, %s467
      %s468 = sphi 0, %s465
      %s469 = sphi 0, %s468
      %s485 = sphi 0, %s469
      %s491 = sphi 0, %s493
      %s494 = sphi 0, %s491
      %s495 = sphi 0, %s494
      %s511 = sphi 0, %s495
      %s517 = sphi 0, %s519
      %s520 = sphi 0, %s517
      %s521 = sphi 0, %s520
      %s537 = sphi 0, %s521
    $region4: #{tpu_custom_call.1} parent=1 // loop_header_branch
      %29 = sbr.rel (%p27) target = $region8
    $region5: #{tpu_custom_call.1} parent=1 // loop_body
      %s31 = ssub.s32 %s26, 1
      %s32 = ssub.s32 %s26, 2
      %s39 = sadd.s32 1, %s34
      %p40 = scmp.ge.s32.totalorder %s39, 2
      %s41 = scalar_select %p40, 0, %s39
      %s42 = sadd.s32 1, %s33
      %s43 = scalar_select %p40, %s42, %s33
      %p44 = scmp.ge.s32.totalorder %s43, 1
      %s45 = scalar_select %p44, 0, %s43
      %s46 = ssub.s32 %s33, %s45
      %p47 = scmp.eq.s32.totalorder %s46, 0
      %s49 = sadd.s32 %s48, 1
      %s50 = scalar_select %p47, %s48, %s49
      %p53 = pneg %p47
      %p54 = scmp.eq.s32.totalorder %s26, 1
      %p55 = por %p53, %p54
      %p56 = scmp.ne.s32.totalorder %s48, %s51
      %p57 = scmp.eq.s32.totalorder %s26, 0
      %p58 = por %p56, %p57
      %p59 = scmp.ne.s32.totalorder %s48, %s51
      %p60 = scmp.eq.s32.totalorder %s31, 1
      %p61 = por %p59, %p60
      %p62 = scmp.ne.s32.totalorder %s51, %s52
      %p63 = scmp.eq.s32.totalorder %s31, 0
      %p64 = por %p62, %p63
      %p65 = scmp.ne.s32.totalorder %s51, %s52
      %p66 = scmp.eq.s32.totalorder %s32, 1
      %p67 = por %p65, %p66
      %p69 = scmp.ne.s32.totalorder %s52, %s68
      %p70 = scmp.eq.s32.totalorder %s32, 0
      %p71 = por %p69, %p70
      %s72 = ssub.s32 %s33, %s45
      %p73 = scmp.eq.s32.totalorder %s72, 0
      %s75 = sadd.s32 %s74, 1
      %s76 = scalar_select %p73, %s74, %s75
      %p79 = pneg %p73
      %p80 = scmp.eq.s32.totalorder %s26, 1
      %p81 = por %p79, %p80
      %p82 = scmp.ne.s32.totalorder %s74, %s77
      %p83 = scmp.eq.s32.totalorder %s26, 0
      %p84 = por %p82, %p83
      %p85 = scmp.ne.s32.totalorder %s74, %s77
      %p86 = scmp.eq.s32.totalorder %s31, 1
      %p87 = por %p85, %p86
      %p88 = scmp.ne.s32.totalorder %s77, %s78
      %p89 = scmp.eq.s32.totalorder %s31, 0
      %p90 = por %p88, %p89
      %p91 = scmp.ne.s32.totalorder %s77, %s78
      %p92 = scmp.eq.s32.totalorder %s32, 1
      %p93 = por %p91, %p92
      %p95 = scmp.ne.s32.totalorder %s78, %s94
      %p96 = scmp.eq.s32.totalorder %s32, 0
      %p97 = por %p95, %p96
      %s99 = sadd.s32 %s98, 1
      %p102 = scmp.eq.s32.totalorder %s26, 1
      %p103 = scmp.ne.s32.totalorder %s98, %s100
      %p104 = scmp.eq.s32.totalorder %s26, 0
      %p105 = por %p103, %p104
      %p106 = scmp.ne.s32.totalorder %s98, %s100
      %p107 = scmp.eq.s32.totalorder %s31, 1
      %p108 = por %p106, %p107
      %p109 = scmp.ne.s32.totalorder %s100, %s101
      %p110 = scmp.eq.s32.totalorder %s31, 0
      %p111 = por %p109, %p110
      %p112 = scmp.ne.s32.totalorder %s100, %s101
      %p113 = scmp.eq.s32.totalorder %s32, 1
      %p114 = por %p112, %p113
      %p116 = scmp.ne.s32.totalorder %s101, %s115
      %p117 = scmp.eq.s32.totalorder %s32, 0
      %p118 = por %p116, %p117
      %s120 = sadd.s32 %s119, 1
      %p123 = scmp.eq.s32.totalorder %s26, 1
      %p124 = scmp.ne.s32.totalorder %s119, %s121
      %p125 = scmp.eq.s32.totalorder %s26, 0
      %p126 = por %p124, %p125
      %p127 = scmp.ne.s32.totalorder %s119, %s121
      %p128 = scmp.eq.s32.totalorder %s31, 1
      %p129 = por %p127, %p128
      %p130 = scmp.ne.s32.totalorder %s121, %s122
      %p131 = scmp.eq.s32.totalorder %s31, 0
      %p132 = por %p130, %p131
      %p133 = scmp.ne.s32.totalorder %s121, %s122
      %p134 = scmp.eq.s32.totalorder %s32, 1
      %p135 = por %p133, %p134
      %p137 = scmp.ne.s32.totalorder %s122, %s136
      %p138 = scmp.eq.s32.totalorder %s32, 0
      %p139 = por %p137, %p138
      %s141 = sadd.s32 %s140, 1
      %p144 = scmp.eq.s32.totalorder %s26, 1
      %p145 = scmp.ne.s32.totalorder %s140, %s142
      %p146 = scmp.eq.s32.totalorder %s26, 0
      %p147 = por %p145, %p146
      %p148 = scmp.ne.s32.totalorder %s140, %s142
      %p149 = scmp.eq.s32.totalorder %s31, 1
      %p150 = por %p148, %p149
      %p151 = scmp.ne.s32.totalorder %s142, %s143
      %p152 = scmp.eq.s32.totalorder %s31, 0
      %p153 = por %p151, %p152
      %p154 = scmp.ne.s32.totalorder %s142, %s143
      %p155 = scmp.eq.s32.totalorder %s32, 1
      %p156 = por %p154, %p155
      %p158 = scmp.ne.s32.totalorder %s143, %s157
      %p159 = scmp.eq.s32.totalorder %s32, 0
      %p160 = por %p158, %p159
      %s162 = sadd.s32 %s161, 1
      %p165 = scmp.eq.s32.totalorder %s26, 1
      %p166 = scmp.ne.s32.totalorder %s161, %s163
      %p167 = scmp.eq.s32.totalorder %s26, 0
      %p168 = por %p166, %p167
      %p169 = scmp.ne.s32.totalorder %s161, %s163
      %p170 = scmp.eq.s32.totalorder %s31, 1
      %p171 = por %p169, %p170
      %p172 = scmp.ne.s32.totalorder %s163, %s164
      %p173 = scmp.eq.s32.totalorder %s31, 0
      %p174 = por %p172, %p173
      %p175 = scmp.ne.s32.totalorder %s163, %s164
      %p176 = scmp.eq.s32.totalorder %s32, 1
      %p177 = por %p175, %p176
      %p179 = scmp.ne.s32.totalorder %s164, %s178
      %p180 = scmp.eq.s32.totalorder %s32, 0
      %p181 = por %p179, %p180
      %s183 = sadd.s32 %s182, 1
      %p186 = scmp.eq.s32.totalorder %s26, 1
      %p187 = scmp.ne.s32.totalorder %s182, %s184
      %p188 = scmp.eq.s32.totalorder %s26, 0
      %p189 = por %p187, %p188
      %p190 = scmp.ne.s32.totalorder %s182, %s184
      %p191 = scmp.eq.s32.totalorder %s31, 1
      %p192 = por %p190, %p191
      %p193 = scmp.ne.s32.totalorder %s184, %s185
      %p194 = scmp.eq.s32.totalorder %s31, 0
      %p195 = por %p193, %p194
      %p196 = scmp.ne.s32.totalorder %s184, %s185
      %p197 = scmp.eq.s32.totalorder %s32, 1
      %p198 = por %p196, %p197
      %p200 = scmp.ne.s32.totalorder %s185, %s199
      %p201 = scmp.eq.s32.totalorder %s32, 0
      %p202 = por %p200, %p201
      %s203 = ssub.s32 %s34, %s41
      %p204 = scmp.eq.s32.totalorder %s203, 0
      %s206 = sadd.s32 %s205, 1
      %s207 = scalar_select %p204, %s205, %s206
      %p210 = pneg %p204
      %p211 = scmp.eq.s32.totalorder %s26, 1
      %p212 = por %p210, %p211
      %p213 = scmp.ne.s32.totalorder %s205, %s208
      %p214 = scmp.eq.s32.totalorder %s26, 0
      %p215 = por %p213, %p214
      %p216 = scmp.ne.s32.totalorder %s205, %s208
      %p217 = scmp.eq.s32.totalorder %s31, 1
      %p218 = por %p216, %p217
      %p219 = scmp.ne.s32.totalorder %s208, %s209
      %p220 = scmp.eq.s32.totalorder %s31, 0
      %p221 = por %p219, %p220
      %p222 = scmp.ne.s32.totalorder %s208, %s209
      %p223 = scmp.eq.s32.totalorder %s32, 1
      %p224 = por %p222, %p223
      %p226 = scmp.ne.s32.totalorder %s209, %s225
      %p227 = scmp.eq.s32.totalorder %s32, 0
      %p228 = por %p226, %p227
      %s229 = ssub.s32 %s34, %s41
      %p230 = scmp.eq.s32.totalorder %s229, 0
      %s232 = sadd.s32 %s231, 1
      %s233 = scalar_select %p230, %s231, %s232
      %p236 = pneg %p230
      %p237 = scmp.eq.s32.totalorder %s26, 1
      %p238 = por %p236, %p237
      %p239 = scmp.ne.s32.totalorder %s231, %s234
      %p240 = scmp.eq.s32.totalorder %s26, 0
      %p241 = por %p239, %p240
      %p242 = scmp.ne.s32.totalorder %s231, %s234
      %p243 = scmp.eq.s32.totalorder %s31, 1
      %p244 = por %p242, %p243
      %p245 = scmp.ne.s32.totalorder %s234, %s235
      %p246 = scmp.eq.s32.totalorder %s31, 0
      %p247 = por %p245, %p246
      %p248 = scmp.ne.s32.totalorder %s234, %s235
      %p249 = scmp.eq.s32.totalorder %s32, 1
      %p250 = por %p248, %p249
      %p252 = scmp.ne.s32.totalorder %s235, %s251
      %p253 = scmp.eq.s32.totalorder %s32, 0
      %p254 = por %p252, %p253
      %s255 = ssub.s32 %s34, %s41
      %p256 = scmp.eq.s32.totalorder %s255, 0
      %s258 = sadd.s32 %s257, 1
      %s259 = scalar_select %p256, %s257, %s258
      %p262 = pneg %p256
      %p263 = scmp.eq.s32.totalorder %s26, 1
      %p264 = por %p262, %p263
      %p265 = scmp.ne.s32.totalorder %s257, %s260
      %p266 = scmp.eq.s32.totalorder %s26, 0
      %p267 = por %p265, %p266
      %p268 = scmp.ne.s32.totalorder %s257, %s260
      %p269 = scmp.eq.s32.totalorder %s31, 1
      %p270 = por %p268, %p269
      %p271 = scmp.ne.s32.totalorder %s260, %s261
      %p272 = scmp.eq.s32.totalorder %s31, 0
      %p273 = por %p271, %p272
      %p274 = scmp.ne.s32.totalorder %s260, %s261
      %p275 = scmp.eq.s32.totalorder %s32, 1
      %p276 = por %p274, %p275
      %p278 = scmp.ne.s32.totalorder %s261, %s277
      %p279 = scmp.eq.s32.totalorder %s32, 0
      %p280 = por %p278, %p279
      %s281 = ssub.s32 %s34, %s41
      %p282 = scmp.eq.s32.totalorder %s281, 0
      %s284 = sadd.s32 %s283, 1
      %s285 = scalar_select %p282, %s283, %s284
      %p288 = pneg %p282
      %p289 = scmp.eq.s32.totalorder %s26, 1
      %p290 = por %p288, %p289
      %p291 = scmp.ne.s32.totalorder %s283, %s286
      %p292 = scmp.eq.s32.totalorder %s26, 0
      %p293 = por %p291, %p292
      %p294 = scmp.ne.s32.totalorder %s283, %s286
      %p295 = scmp.eq.s32.totalorder %s31, 1
      %p296 = por %p294, %p295
      %p297 = scmp.ne.s32.totalorder %s286, %s287
      %p298 = scmp.eq.s32.totalorder %s31, 0
      %p299 = por %p297, %p298
      %p300 = scmp.ne.s32.totalorder %s286, %s287
      %p301 = scmp.eq.s32.totalorder %s32, 1
      %p302 = por %p300, %p301
      %p304 = scmp.ne.s32.totalorder %s287, %s303
      %p305 = scmp.eq.s32.totalorder %s32, 0
      %p306 = por %p304, %p305
      %s307 = ssub.s32 %s34, %s41
      %p308 = scmp.eq.s32.totalorder %s307, 0
      %s310 = sadd.s32 %s309, 1
      %s311 = scalar_select %p308, %s309, %s310
      %p314 = pneg %p308
      %p315 = scmp.eq.s32.totalorder %s26, 1
      %p316 = por %p314, %p315
      %p317 = scmp.ne.s32.totalorder %s309, %s312
      %p318 = scmp.eq.s32.totalorder %s26, 0
      %p319 = por %p317, %p318
      %p320 = scmp.ne.s32.totalorder %s309, %s312
      %p321 = scmp.eq.s32.totalorder %s31, 1
      %p322 = por %p320, %p321
      %p323 = scmp.ne.s32.totalorder %s312, %s313
      %p324 = scmp.eq.s32.totalorder %s31, 0
      %p325 = por %p323, %p324
      %p326 = scmp.ne.s32.totalorder %s312, %s313
      %p327 = scmp.eq.s32.totalorder %s32, 1
      %p328 = por %p326, %p327
      %p330 = scmp.ne.s32.totalorder %s313, %s329
      %p331 = scmp.eq.s32.totalorder %s32, 0
      %p332 = por %p330, %p331
      %s333 = ssub.s32 %s34, %s41
      %p334 = scmp.eq.s32.totalorder %s333, 0
      %s336 = sadd.s32 %s335, 1
      %s337 = scalar_select %p334, %s335, %s336
      %p340 = pneg %p334
      %p341 = scmp.eq.s32.totalorder %s26, 1
      %p342 = por %p340, %p341
      %p343 = scmp.ne.s32.totalorder %s335, %s338
      %p344 = scmp.eq.s32.totalorder %s26, 0
      %p345 = por %p343, %p344
      %p346 = scmp.ne.s32.totalorder %s335, %s338
      %p347 = scmp.eq.s32.totalorder %s31, 1
      %p348 = por %p346, %p347
      %p349 = scmp.ne.s32.totalorder %s338, %s339
      %p350 = scmp.eq.s32.totalorder %s31, 0
      %p351 = por %p349, %p350
      %p352 = scmp.ne.s32.totalorder %s338, %s339
      %p353 = scmp.eq.s32.totalorder %s32, 1
      %p354 = por %p352, %p353
      %p356 = scmp.ne.s32.totalorder %s339, %s355
      %p357 = scmp.eq.s32.totalorder %s32, 0
      %p358 = por %p356, %p357
      %s359 = ssub.s32 %s34, %s41
      %p360 = scmp.eq.s32.totalorder %s359, 0
      %s362 = sadd.s32 %s361, 1
      %s363 = scalar_select %p360, %s361, %s362
      %p366 = pneg %p360
      %p367 = scmp.eq.s32.totalorder %s26, 1
      %p368 = por %p366, %p367
      %p369 = scmp.ne.s32.totalorder %s361, %s364
      %p370 = scmp.eq.s32.totalorder %s26, 0
      %p371 = por %p369, %p370
      %p372 = scmp.ne.s32.totalorder %s361, %s364
      %p373 = scmp.eq.s32.totalorder %s31, 1
      %p374 = por %p372, %p373
      %p375 = scmp.ne.s32.totalorder %s364, %s365
      %p376 = scmp.eq.s32.totalorder %s31, 0
      %p377 = por %p375, %p376
      %p378 = scmp.ne.s32.totalorder %s364, %s365
      %p379 = scmp.eq.s32.totalorder %s32, 1
      %p380 = por %p378, %p379
      %p382 = scmp.ne.s32.totalorder %s365, %s381
      %p383 = scmp.eq.s32.totalorder %s32, 0
      %p384 = por %p382, %p383
      %s385 = ssub.s32 %s34, %s41
      %p386 = scmp.eq.s32.totalorder %s385, 0
      %s388 = sadd.s32 %s387, 1
      %s389 = scalar_select %p386, %s387, %s388
      %p392 = pneg %p386
      %p393 = scmp.eq.s32.totalorder %s26, 1
      %p394 = por %p392, %p393
      %p395 = scmp.ne.s32.totalorder %s387, %s390
      %p396 = scmp.eq.s32.totalorder %s26, 0
      %p397 = por %p395, %p396
      %p398 = scmp.ne.s32.totalorder %s387, %s390
      %p399 = scmp.eq.s32.totalorder %s31, 1
      %p400 = por %p398, %p399
      %p401 = scmp.ne.s32.totalorder %s390, %s391
      %p402 = scmp.eq.s32.totalorder %s31, 0
      %p403 = por %p401, %p402
      %p404 = scmp.ne.s32.totalorder %s390, %s391
      %p405 = scmp.eq.s32.totalorder %s32, 1
      %p406 = por %p404, %p405
      %p408 = scmp.ne.s32.totalorder %s391, %s407
      %p409 = scmp.eq.s32.totalorder %s32, 0
      %p410 = por %p408, %p409
      %s411 = ssub.s32 %s34, %s41
      %p412 = scmp.eq.s32.totalorder %s411, 0
      %s414 = sadd.s32 %s413, 1
      %s415 = scalar_select %p412, %s413, %s414
      %p418 = pneg %p412
      %p419 = scmp.eq.s32.totalorder %s26, 1
      %p420 = por %p418, %p419
      %p421 = scmp.ne.s32.totalorder %s413, %s416
      %p422 = scmp.eq.s32.totalorder %s26, 0
      %p423 = por %p421, %p422
      %p424 = scmp.ne.s32.totalorder %s413, %s416
      %p425 = scmp.eq.s32.totalorder %s31, 1
      %p426 = por %p424, %p425
      %p427 = scmp.ne.s32.totalorder %s416, %s417
      %p428 = scmp.eq.s32.totalorder %s31, 0
      %p429 = por %p427, %p428
      %p430 = scmp.ne.s32.totalorder %s416, %s417
      %p431 = scmp.eq.s32.totalorder %s32, 1
      %p432 = por %p430, %p431
      %p434 = scmp.ne.s32.totalorder %s417, %s433
      %p435 = scmp.eq.s32.totalorder %s32, 0
      %p436 = por %p434, %p435
      %s437 = ssub.s32 %s34, %s41
      %p438 = scmp.eq.s32.totalorder %s437, 0
      %s440 = sadd.s32 %s439, 1
      %s441 = scalar_select %p438, %s439, %s440
      %p444 = pneg %p438
      %p445 = scmp.eq.s32.totalorder %s26, 1
      %p446 = por %p444, %p445
      %p447 = scmp.ne.s32.totalorder %s439, %s442
      %p448 = scmp.eq.s32.totalorder %s26, 0
      %p449 = por %p447, %p448
      %p450 = scmp.ne.s32.totalorder %s439, %s442
      %p451 = scmp.eq.s32.totalorder %s31, 1
      %p452 = por %p450, %p451
      %p453 = scmp.ne.s32.totalorder %s442, %s443
      %p454 = scmp.eq.s32.totalorder %s31, 0
      %p455 = por %p453, %p454
      %p456 = scmp.ne.s32.totalorder %s442, %s443
      %p457 = scmp.eq.s32.totalorder %s32, 1
      %p458 = por %p456, %p457
      %p460 = scmp.ne.s32.totalorder %s443, %s459
      %p461 = scmp.eq.s32.totalorder %s32, 0
      %p462 = por %p460, %p461
      %s463 = ssub.s32 %s34, %s41
      %p464 = scmp.eq.s32.totalorder %s463, 0
      %s466 = sadd.s32 %s465, 1
      %s467 = scalar_select %p464, %s465, %s466
      %p470 = pneg %p464
      %p471 = scmp.eq.s32.totalorder %s26, 1
      %p472 = por %p470, %p471
      %p473 = scmp.ne.s32.totalorder %s465, %s468
      %p474 = scmp.eq.s32.totalorder %s26, 0
      %p475 = por %p473, %p474
      %p476 = scmp.ne.s32.totalorder %s465, %s468
      %p477 = scmp.eq.s32.totalorder %s31, 1
      %p478 = por %p476, %p477
      %p479 = scmp.ne.s32.totalorder %s468, %s469
      %p480 = scmp.eq.s32.totalorder %s31, 0
      %p481 = por %p479, %p480
      %p482 = scmp.ne.s32.totalorder %s468, %s469
      %p483 = scmp.eq.s32.totalorder %s32, 1
      %p484 = por %p482, %p483
      %p486 = scmp.ne.s32.totalorder %s469, %s485
      %p487 = scmp.eq.s32.totalorder %s32, 0
      %p488 = por %p486, %p487
      %s489 = ssub.s32 %s34, %s41
      %p490 = scmp.eq.s32.totalorder %s489, 0
      %s492 = sadd.s32 %s491, 1
      %s493 = scalar_select %p490, %s491, %s492
      %p496 = pneg %p490
      %p497 = scmp.eq.s32.totalorder %s26, 1
      %p498 = por %p496, %p497
      %p499 = scmp.ne.s32.totalorder %s491, %s494
      %p500 = scmp.eq.s32.totalorder %s26, 0
      %p501 = por %p499, %p500
      %p502 = scmp.ne.s32.totalorder %s491, %s494
      %p503 = scmp.eq.s32.totalorder %s31, 1
      %p504 = por %p502, %p503
      %p505 = scmp.ne.s32.totalorder %s494, %s495
      %p506 = scmp.eq.s32.totalorder %s31, 0
      %p507 = por %p505, %p506
      %p508 = scmp.ne.s32.totalorder %s494, %s495
      %p509 = scmp.eq.s32.totalorder %s32, 1
      %p510 = por %p508, %p509
      %p512 = scmp.ne.s32.totalorder %s495, %s511
      %p513 = scmp.eq.s32.totalorder %s32, 0
      %p514 = por %p512, %p513
      %s515 = ssub.s32 %s33, %s45
      %p516 = scmp.eq.s32.totalorder %s515, 0
      %s518 = sadd.s32 %s517, 1
      %s519 = scalar_select %p516, %s517, %s518
      %p522 = pneg %p516
      %p523 = scmp.eq.s32.totalorder %s26, 1
      %p524 = por %p522, %p523
      %p525 = scmp.ne.s32.totalorder %s517, %s520
      %p526 = scmp.eq.s32.totalorder %s26, 0
      %p527 = por %p525, %p526
      %p528 = scmp.ne.s32.totalorder %s517, %s520
      %p529 = scmp.eq.s32.totalorder %s31, 1
      %p530 = por %p528, %p529
      %p531 = scmp.ne.s32.totalorder %s520, %s521
      %p532 = scmp.eq.s32.totalorder %s31, 0
      %p533 = por %p531, %p532
      %p534 = scmp.ne.s32.totalorder %s520, %s521
      %p535 = scmp.eq.s32.totalorder %s32, 1
      %p536 = por %p534, %p535
      %p538 = scmp.ne.s32.totalorder %s521, %s537
      %p539 = scmp.eq.s32.totalorder %s32, 0
      %p540 = por %p538, %p539
      %p541 = scmp.le.s32.totalorder 1, %s26
      %p542 = scmp.lt.s32.totalorder %s26, 3
      %p543 = pnand %p541, %p542
      %p544 = pneg %p543
      // Predicated region
      $region9: #{tpu_custom_call.1} parent=5 // pred_check
        _
      $region10: #{tpu_custom_call.1} parent=5 // pred_check_branch
        %546 = sbr.rel (%p543) target = $region12
      $region11: #{tpu_custom_call.1} parent=5 // pred_region
        %s547 = ssub.s32 %s26, 1
        // Predicated region
        $region13: #{tpu_custom_call.1} parent=11 // pred_check
          %p548 = pneg %p64
        $region14: #{tpu_custom_call.1} parent=11 // pred_check_branch
          %550 = sbr.rel (%p548) target = $region16
        $region15: #{tpu_custom_call.1} parent=11 // pred_region
          %s551 = smul.u32 2, %s35
          %p552 = scmp.lt.s32.totalorder %s551, 1
          %s553 = scalar_select %p552, %s551, 1
          %s554 = smul.addr %s553, 4
          %s555 = scalar_lea.vmem %s0, %s554
          %s556 = smul.u32 2, %s35
        $region16: #{tpu_custom_call.1} parent=11 // pred_fallthru
          _
        // Predicated region
        $region17: #{tpu_custom_call.1} parent=11 // pred_check
          %p557 = pneg %p90
        $region18: #{tpu_custom_call.1} parent=11 // pred_check_branch
          %559 = sbr.rel (%p557) target = $region20
        $region19: #{tpu_custom_call.1} parent=11 // pred_region
          %s560 = smul.u32 2, %s35
          %p561 = scmp.lt.s32.totalorder %s560, 1
          %s562 = scalar_select %p561, %s560, 1
          %s563 = scalar_lea.vmem %s1, %s562
          %s564 = smul.u32 2, %s35
        $region20: #{tpu_custom_call.1} parent=11 // pred_fallthru
          _
        // Predicated region
        $region21: #{tpu_custom_call.1} parent=11 // pred_check
          %p565 = pneg %p111
        $region22: #{tpu_custom_call.1} parent=11 // pred_check_branch
          %567 = sbr.rel (%p565) target = $region24
        $region23: #{tpu_custom_call.1} parent=11 // pred_region
          _
        $region24: #{tpu_custom_call.1} parent=11 // pred_fallthru
          _
        // Predicated region
        $region25: #{tpu_custom_call.1} parent=11 // pred_check
          %p568 = pneg %p132
        $region26: #{tpu_custom_call.1} parent=11 // pred_check_branch
          %570 = sbr.rel (%p568) target = $region28
        $region27: #{tpu_custom_call.1} parent=11 // pred_region
          _
        $region28: #{tpu_custom_call.1} parent=11 // pred_fallthru
          _
        // Predicated region
        $region29: #{tpu_custom_call.1} parent=11 // pred_check
          %p571 = pneg %p153
        $region30: #{tpu_custom_call.1} parent=11 // pred_check_branch
          %573 = sbr.rel (%p571) target = $region32
        $region31: #{tpu_custom_call.1} parent=11 // pred_region
          _
        $region32: #{tpu_custom_call.1} parent=11 // pred_fallthru
          _
        // Predicated region
        $region33: #{tpu_custom_call.1} parent=11 // pred_check
          %p574 = pneg %p174
        $region34: #{tpu_custom_call.1} parent=11 // pred_check_branch
          %576 = sbr.rel (%p574) target = $region36
        $region35: #{tpu_custom_call.1} parent=11 // pred_region
          _
        $region36: #{tpu_custom_call.1} parent=11 // pred_fallthru
          _
        // Predicated region
        $region37: #{tpu_custom_call.1} parent=11 // pred_check
          %p577 = pneg %p195
        $region38: #{tpu_custom_call.1} parent=11 // pred_check_branch
          %579 = sbr.rel (%p577) target = $region40
        $region39: #{tpu_custom_call.1} parent=11 // pred_region
          _
        $region40: #{tpu_custom_call.1} parent=11 // pred_fallthru
          _
      $region12: #{tpu_custom_call.1} parent=5 // pred_fallthru
        _
      %p580 = scmp.lt.s32.totalorder %s26, 2
      // Predicated region
      $region41: #{tpu_custom_call.1} parent=5 // pred_check
        %p581 = pneg %p580
      $region42: #{tpu_custom_call.1} parent=5 // pred_check_branch
        %583 = sbr.rel (%p581) target = $region44
      $region43: #{tpu_custom_call.1} parent=5 // pred_region
        // Predicated region
        $region45: #{tpu_custom_call.1} parent=43 // pred_check
          %p584 = pneg %p215
        $region46: #{tpu_custom_call.1} parent=43 // pred_check_branch
          %586 = sbr.rel (%p584) target = $region48
        $region47: #{tpu_custom_call.1} parent=43 // pred_region
          %p587 = scmp.lt.s32.totalorder %s34, 1
          %s588 = scalar_select %p587, %s34, 1
          %s589 = smul.addr %s588, 12
          %s590 = smul.addr %s589, 4
          %s591 = scalar_lea.vmem %s7, %s590
        $region48: #{tpu_custom_call.1} parent=43 // pred_fallthru
          _
        // Predicated region
        $region49: #{tpu_custom_call.1} parent=43 // pred_check
          %p592 = pneg %p241
        $region50: #{tpu_custom_call.1} parent=43 // pred_check_branch
          %594 = sbr.rel (%p592) target = $region52
        $region51: #{tpu_custom_call.1} parent=43 // pred_region
          %p595 = scmp.lt.s32.totalorder %s34, 1
          %s596 = scalar_select %p595, %s34, 1
          %s597 = smul.addr %s596, 2
          %s598 = scalar_lea.vmem %s8, %s597
        $region52: #{tpu_custom_call.1} parent=43 // pred_fallthru
          _
        // Predicated region
        $region53: #{tpu_custom_call.1} parent=43 // pred_check
          %p599 = pneg %p267
        $region54: #{tpu_custom_call.1} parent=43 // pred_check_branch
          %601 = sbr.rel (%p599) target = $region56
        $region55: #{tpu_custom_call.1} parent=43 // pred_region
          %p602 = scmp.lt.s32.totalorder %s34, 1
          %s603 = scalar_select %p602, %s34, 1
          %s604 = smul.addr %s603, 6
          %s605 = smul.addr %s604, 4
          %s606 = scalar_lea.vmem %s9, %s605
        $region56: #{tpu_custom_call.1} parent=43 // pred_fallthru
          _
        // Predicated region
        $region57: #{tpu_custom_call.1} parent=43 // pred_check
          %p607 = pneg %p293
        $region58: #{tpu_custom_call.1} parent=43 // pred_check_branch
          %609 = sbr.rel (%p607) target = $region60
        $region59: #{tpu_custom_call.1} parent=43 // pred_region
          %p610 = scmp.lt.s32.totalorder %s34, 1
          %s611 = scalar_select %p610, %s34, 1
          %s612 = scalar_lea.vmem %s10, %s611
        $region60: #{tpu_custom_call.1} parent=43 // pred_fallthru
          _
        // Predicated region
        $region61: #{tpu_custom_call.1} parent=43 // pred_check
          %p613 = pneg %p319
        $region62: #{tpu_custom_call.1} parent=43 // pred_check_branch
          %615 = sbr.rel (%p613) target = $region64
        $region63: #{tpu_custom_call.1} parent=43 // pred_region
          %p616 = scmp.lt.s32.totalorder %s34, 1
          %s617 = scalar_select %p616, %s34, 1
          %s618 = scalar_lea.vmem %s11, %s617
        $region64: #{tpu_custom_call.1} parent=43 // pred_fallthru
          _
        // Predicated region
        $region65: #{tpu_custom_call.1} parent=43 // pred_check
          %p619 = pneg %p345
        $region66: #{tpu_custom_call.1} parent=43 // pred_check_branch
          %621 = sbr.rel (%p619) target = $region68
        $region67: #{tpu_custom_call.1} parent=43 // pred_region
          %p622 = scmp.lt.s32.totalorder %s34, 1
          %s623 = scalar_select %p622, %s34, 1
          %s624 = scalar_lea.vmem %s12, %s623
        $region68: #{tpu_custom_call.1} parent=43 // pred_fallthru
          _
        // Predicated region
        $region69: #{tpu_custom_call.1} parent=43 // pred_check
          %p625 = pneg %p371
        $region70: #{tpu_custom_call.1} parent=43 // pred_check_branch
          %627 = sbr.rel (%p625) target = $region72
        $region71: #{tpu_custom_call.1} parent=43 // pred_region
          %p628 = scmp.lt.s32.totalorder %s34, 1
          %s629 = scalar_select %p628, %s34, 1
          %s630 = smul.addr %s629, 12
          %s631 = smul.addr %s630, 4
          %s632 = scalar_lea.vmem %s13, %s631
        $region72: #{tpu_custom_call.1} parent=43 // pred_fallthru
          _
        // Predicated region
        $region73: #{tpu_custom_call.1} parent=43 // pred_check
          %p633 = pneg %p397
        $region74: #{tpu_custom_call.1} parent=43 // pred_check_branch
          %635 = sbr.rel (%p633) target = $region76
        $region75: #{tpu_custom_call.1} parent=43 // pred_region
          %p636 = scmp.lt.s32.totalorder %s34, 1
          %s637 = scalar_select %p636, %s34, 1
          %s638 = smul.addr %s637, 2
          %s639 = scalar_lea.vmem %s14, %s638
        $region76: #{tpu_custom_call.1} parent=43 // pred_fallthru
          _
        // Predicated region
        $region77: #{tpu_custom_call.1} parent=43 // pred_check
          %p640 = pneg %p423
        $region78: #{tpu_custom_call.1} parent=43 // pred_check_branch
          %642 = sbr.rel (%p640) target = $region80
        $region79: #{tpu_custom_call.1} parent=43 // pred_region
          %p643 = scmp.lt.s32.totalorder %s34, 1
          %s644 = scalar_select %p643, %s34, 1
          %s645 = smul.addr %s644, 24
          %s646 = smul.addr %s645, 4
          %s647 = scalar_lea.vmem %s15, %s646
        $region80: #{tpu_custom_call.1} parent=43 // pred_fallthru
          _
        // Predicated region
        $region81: #{tpu_custom_call.1} parent=43 // pred_check
          %p648 = pneg %p449
        $region82: #{tpu_custom_call.1} parent=43 // pred_check_branch
          %650 = sbr.rel (%p648) target = $region84
        $region83: #{tpu_custom_call.1} parent=43 // pred_region
          %p651 = scmp.lt.s32.totalorder %s34, 1
          %s652 = scalar_select %p651, %s34, 1
          %s653 = scalar_lea.vmem %s16, %s652
        $region84: #{tpu_custom_call.1} parent=43 // pred_fallthru
          _
        // Predicated region
        $region85: #{tpu_custom_call.1} parent=43 // pred_check
          %p654 = pneg %p475
        $region86: #{tpu_custom_call.1} parent=43 // pred_check_branch
          %656 = sbr.rel (%p654) target = $region88
        $region87: #{tpu_custom_call.1} parent=43 // pred_region
          %p657 = scmp.lt.s32.totalorder %s34, 1
          %s658 = scalar_select %p657, %s34, 1
          %s659 = scalar_lea.vmem %s17, %s658
        $region88: #{tpu_custom_call.1} parent=43 // pred_fallthru
          _
        // Predicated region
        $region89: #{tpu_custom_call.1} parent=43 // pred_check
          %p660 = pneg %p501
        $region90: #{tpu_custom_call.1} parent=43 // pred_check_branch
          %662 = sbr.rel (%p660) target = $region92
        $region91: #{tpu_custom_call.1} parent=43 // pred_region
          %p663 = scmp.lt.s32.totalorder %s34, 1
          %s664 = scalar_select %p663, %s34, 1
          %s665 = scalar_lea.vmem %s18, %s664
        $region92: #{tpu_custom_call.1} parent=43 // pred_fallthru
          _
      $region44: #{tpu_custom_call.1} parent=5 // pred_fallthru
        _
      %p666 = scmp.le.s32.totalorder 1, %s26
      %p667 = scmp.lt.s32.totalorder %s26, 3
      %p668 = pnand %p666, %p667
      %p669 = pneg %p668
      // Predicated region
      $region93: #{tpu_custom_call.1} parent=5 // pred_check
        _
      $region94: #{tpu_custom_call.1} parent=5 // pred_check_branch
        %671 = sbr.rel (%p668) target = $region96
      $region95: #{tpu_custom_call.1} parent=5 // pred_region
        %s672 = ssub.s32 %s26, 1
        %s673 = smul.u32 2, %s35
        %p674 = scmp.lt.s32.totalorder %s673, 1
        %s675 = scalar_select %p674, %s673, 1
        %s676 = smul.addr %s675, 4
        %s677 = scalar_lea.vmem %s0, %s676
        %p678 = pneg %p64
        %p679 = pneg %p61
        %s680 = smul.u32 2, %s35
        %p681 = scmp.lt.s32.totalorder %s680, 1
        %s682 = scalar_select %p681, %s680, 1
        %s683 = scalar_lea.vmem %s1, %s682
        %p684 = pneg %p90
        %p685 = pneg %p87
        %p686 = pneg %p111
        %p687 = pneg %p108
        %p688 = pneg %p132
        %p689 = pneg %p129
        %p690 = pneg %p153
        %p691 = pneg %p150
        %p692 = pneg %p174
        %p693 = pneg %p171
        %p694 = pneg %p195
        %p695 = pneg %p192
        %p696 = scmp.lt.s32.totalorder %s36, 1
        %s697 = scalar_select %p696, %s36, 1
        %s698 = smul.addr %s697, 12
        %s699 = smul.addr %s698, 4
        %s700 = scalar_lea.vmem %s7, %s699
        %p701 = pneg %p221
        %p702 = pneg %p218
        %p703 = scmp.lt.s32.totalorder %s36, 1
        %s704 = scalar_select %p703, %s36, 1
        %s705 = smul.addr %s704, 2
        %s706 = scalar_lea.vmem %s8, %s705
        %p707 = pneg %p247
        %p708 = pneg %p244
        %p709 = scmp.lt.s32.totalorder %s36, 1
        %s710 = scalar_select %p709, %s36, 1
        %s711 = smul.addr %s710, 6
        %s712 = smul.addr %s711, 4
        %s713 = scalar_lea.vmem %s9, %s712
        %p714 = pneg %p273
        %p715 = pneg %p270
        %p716 = scmp.lt.s32.totalorder %s36, 1
        %s717 = scalar_select %p716, %s36, 1
        %s718 = scalar_lea.vmem %s10, %s717
        %p719 = pneg %p299
        %p720 = pneg %p296
        %p721 = scmp.lt.s32.totalorder %s36, 1
        %s722 = scalar_select %p721, %s36, 1
        %s723 = scalar_lea.vmem %s11, %s722
        %p724 = pneg %p325
        %p725 = pneg %p322
        %p726 = scmp.lt.s32.totalorder %s36, 1
        %s727 = scalar_select %p726, %s36, 1
        %s728 = scalar_lea.vmem %s12, %s727
        %p729 = pneg %p351
        %p730 = pneg %p348
        %p731 = scmp.lt.s32.totalorder %s36, 1
        %s732 = scalar_select %p731, %s36, 1
        %s733 = smul.addr %s732, 12
        %s734 = smul.addr %s733, 4
        %s735 = scalar_lea.vmem %s13, %s734
        %p736 = pneg %p377
        %p737 = pneg %p374
        %p738 = scmp.lt.s32.totalorder %s36, 1
        %s739 = scalar_select %p738, %s36, 1
        %s740 = smul.addr %s739, 2
        %s741 = scalar_lea.vmem %s14, %s740
        %p742 = pneg %p403
        %p743 = pneg %p400
        %p744 = scmp.lt.s32.totalorder %s36, 1
        %s745 = scalar_select %p744, %s36, 1
        %s746 = smul.addr %s745, 24
        %s747 = smul.addr %s746, 4
        %s748 = scalar_lea.vmem %s15, %s747
        %p749 = pneg %p429
        %p750 = pneg %p426
        %p751 = scmp.lt.s32.totalorder %s36, 1
        %s752 = scalar_select %p751, %s36, 1
        %s753 = scalar_lea.vmem %s16, %s752
        %p754 = pneg %p455
        %p755 = pneg %p452
        %p756 = scmp.lt.s32.totalorder %s36, 1
        %s757 = scalar_select %p756, %s36, 1
        %s758 = scalar_lea.vmem %s17, %s757
        %p759 = pneg %p481
        %p760 = pneg %p478
        %p761 = scmp.lt.s32.totalorder %s36, 1
        %s762 = scalar_select %p761, %s36, 1
        %s763 = scalar_lea.vmem %s18, %s762
        %p764 = pneg %p507
        %p765 = pneg %p504
        %p766 = pneg %p533
        %p767 = pneg %p530
        %s768 = smul.u32 2, %s35
        %p769 = scmp.lt.s32.totalorder %s768, 1
        %s770 = scalar_select %p769, %s768, 1
        %s771 = smul.addr %s770, 4
        %s772 = scalar_lea.vmem %s0, %s771
        %s773 = smul.u32 2, %s35
        %s774 = smul.u32 2, %s35
        %p775 = scmp.lt.s32.totalorder %s774, 1
        %s776 = scalar_select %p775, %s774, 1
        %s777 = scalar_lea.vmem %s1, %s776
        %s778 = smul.u32 2, %s35
        %p779 = scmp.lt.s32.totalorder %s36, 1
        %s780 = scalar_select %p779, %s36, 1
        %s781 = smul.addr %s780, 12
        %s782 = smul.addr %s781, 4
        %s783 = scalar_lea.vmem %s7, %s782
        %p784 = scmp.lt.s32.totalorder %s36, 1
        %s785 = scalar_select %p784, %s36, 1
        %s786 = smul.addr %s785, 2
        %s787 = scalar_lea.vmem %s8, %s786
        %p788 = scmp.lt.s32.totalorder %s36, 1
        %s789 = scalar_select %p788, %s36, 1
        %s790 = smul.addr %s789, 6
        %s791 = smul.addr %s790, 4
        %s792 = scalar_lea.vmem %s9, %s791
        %p793 = scmp.lt.s32.totalorder %s36, 1
        %s794 = scalar_select %p793, %s36, 1
        %s795 = scalar_lea.vmem %s10, %s794
        %p796 = scmp.lt.s32.totalorder %s36, 1
        %s797 = scalar_select %p796, %s36, 1
        %s798 = scalar_lea.vmem %s11, %s797
        %p799 = scmp.lt.s32.totalorder %s36, 1
        %s800 = scalar_select %p799, %s36, 1
        %s801 = scalar_lea.vmem %s12, %s800
        %p802 = scmp.lt.s32.totalorder %s36, 1
        %s803 = scalar_select %p802, %s36, 1
        %s804 = smul.addr %s803, 12
        %s805 = smul.addr %s804, 4
        %s806 = scalar_lea.vmem %s13, %s805
        %p807 = scmp.lt.s32.totalorder %s36, 1
        %s808 = scalar_select %p807, %s36, 1
        %s809 = smul.addr %s808, 2
        %s810 = scalar_lea.vmem %s14, %s809
        %p811 = scmp.lt.s32.totalorder %s36, 1
        %s812 = scalar_select %p811, %s36, 1
        %s813 = smul.addr %s812, 24
        %s814 = smul.addr %s813, 4
        %s815 = scalar_lea.vmem %s15, %s814
        %p816 = scmp.lt.s32.totalorder %s36, 1
        %s817 = scalar_select %p816, %s36, 1
        %s818 = scalar_lea.vmem %s16, %s817
        %p819 = scmp.lt.s32.totalorder %s36, 1
        %s820 = scalar_select %p819, %s36, 1
        %s821 = scalar_lea.vmem %s17, %s820
        %p822 = scmp.lt.s32.totalorder %s36, 1
        %s823 = scalar_select %p822, %s36, 1
        %s824 = scalar_lea.vmem %s18, %s823
        %s825 = smul.u32 2, %s35
        %p827 = scmp.eq.s32.totalorder %s36, 0
        // Predicated region
        $region97: #{tpu_custom_call.1} parent=95 // pred_check
          %p828 = pneg %p827
        $region98: #{tpu_custom_call.1} parent=95 // pred_check_branch
          %830 = sbr.rel (%p828) target = $region100
        $region99: #{tpu_custom_call.1} parent=95 // pred_region
          %v831 = vld [vmem:[%s772] sm:$0xf]
          %v832 = vld [vmem:[%s772 + $0x4] sm:$0xf]
          %v833 = vld [vmem:[%s2] sm:$0xf]
          %v834 = vld [vmem:[%s2 + $0x4] sm:$0xf]
          %v835 = vld [vmem:[%s2 + $0x8] sm:$0xf]
          %v836 = vld [vmem:[%s2 + $0xc] sm:$0xf]
          %v837 = vld [vmem:[%s2 + $0x10] sm:$0xf]
          %v838 = vld [vmem:[%s2 + $0x14] sm:$0xf]
          %v839 = vld [vmem:[%s2 + $0x18] sm:$0xf]
          %v840 = vld [vmem:[%s2 + $0x1c] sm:$0xf]
          %v841 = vld [vmem:[%s3] sm:$0x1]
          %v843 = vlaneseq
          %v844 = vshrl.u32 %v843, 7
          %v845 = vsub.s32 0, %v844
          %v846 = vrot.slane %v841, %v845
          %v850 = vunpack.c.l.b16 %v831
          %v851 = vunpack.c.l.b16 %v832
          %v852 = vpack.c.b16 %v851, %v850
          %v861 = vunpack.c.l.b16 %v833
          %v862 = vunpack.c.l.b16 %v834
          %v863 = vunpack.c.l.b16 %v835
          %v864 = vunpack.c.l.b16 %v836
          %v865 = vunpack.c.l.b16 %v837
          %v866 = vunpack.c.l.b16 %v838
          %v867 = vunpack.c.l.b16 %v839
          %v868 = vunpack.c.l.b16 %v840
          %v869 = vpack.c.b16 %v862, %v861
          %v870 = vpack.c.b16 %v864, %v863
          %v871 = vpack.c.b16 %v866, %v865
          %v872 = vpack.c.b16 %v868, %v867
          %vm877 = vcmask 523264
          %v879 = vsel %vm877, %v852, 0
          %881 = vmatprep.subr.bf16.mxu0 0
          %882 = vmatpush1.bf16.msra.mxu0 %v869
          %883 = vmatprep.subr.bf16.mxu0 0
          %884 = vmatpush1.bf16.msra.mxu0 %v870
          %885 = vmatprep.subr.bf16.mxu0 0
          %886 = vmatpush1.bf16.msra.mxu0 %v871
          %887 = vmatprep.subr.bf16.mxu0 0
          %888 = vmatpush1.bf16.msra.mxu0 %v872
          %889 = vmatprep.subr.bf16.mxu0 0
          %890 = vmatpush1.bf16.msra.mxu0 0
          %891 = vmatprep.subr.bf16.mxu0 0
          %892 = vmatpush1.bf16.msra.mxu0 0
          %893 = vmatprep.subr.bf16.mxu0 0
          %894 = vmatpush1.bf16.msra.mxu0 0
          %895 = vmatprep.subr.bf16.mxu0 0
          %896 = vmatpush1.bf16.msra.mxu0 0
          %897 = vmatprep.subr.bf16.mxu0 0
          %898 = vmatpush1.bf16.msra.mxu0 0
          %899 = vmatprep.subr.bf16.mxu0 0
          %900 = vmatpush1.bf16.msra.mxu0 0
          %901 = vmatprep.subr.bf16.mxu0 0
          %902 = vmatpush1.bf16.msra.mxu0 0
          %903 = vmatprep.subr.bf16.mxu0 0
          %904 = vmatpush1.bf16.msra.mxu0 0
          %905 = vmatprep.subr.bf16.mxu0 0
          %906 = vmatpush1.bf16.msra.mxu0 0
          %907 = vmatprep.subr.bf16.mxu0 0
          %908 = vmatpush1.bf16.msra.mxu0 0
          %909 = vmatprep.subr.bf16.mxu0 0
          %910 = vmatpush1.bf16.msra.mxu0 0
          %911 = vmatprep.subr.bf16.mxu0 0
          %912 = vmatpush1.bf16.msra.mxu0 0
          %913 = vmatprep.mubr.bf16.mxu0 0
          %914 = vmatmul.mubr.bf16.gmra.mrb[0].mxu0 %v879
          %v915 = vpop.f32.mrb[0].mxu0
          %v916 = vadd.f32 %v846, %v915
          %v917 = vpop.f32.mrb[0].mxu0
          %v918 = vpop.f32.mrb[0].mxu0
          %v919 = vadd.f32 %v846, %v918
          %v920 = vpop.f32.mrb[0].mxu0
          %921 = vdwg.mxu0
          %v922 = vld [vmem:[%s4] sm:$0xff]
          %v923 = vadd.f32 %v916, %v922
          %v924 = vadd.f32 %v919, %v922
          %v925 = vld [vmem:[%s5] sm:$0x1]
          %v926 = vld [vmem:[%s6] sm:$0x1]
          %vm927 = vcmask 392192
          %v928 = vsel %vm927, %v923, 0.0
          %929 = vadd.xlane.f32.xlu0 %v928
          %v930 = vpop.xlane.xlu0 %929
          %v931 = vsel %vm927, %v924, 0.0
          %932 = vadd.xlane.f32.xlu0 %v931
          %v933 = vpop.xlane.xlu0 %932
          %v934 = vrcp.pop 48.0
          %v935 = vmul.f32 %v930, %v934
          %v936 = vmul.f32 %v933, %v934
          %v937 = vsub.f32 %v923, %v935
          %v938 = vsub.f32 %v924, %v936
          %v939 = vmul.f32 %v937, %v937
          %v940 = vmul.f32 %v938, %v938
          %v941 = vsel %vm927, %v939, 0.0
          %942 = vadd.xlane.f32.xlu0 %v941
          %v943 = vpop.xlane.xlu0 %942
          %v944 = vsel %vm927, %v940, 0.0
          %945 = vadd.xlane.f32.xlu0 %v944
          %v946 = vpop.xlane.xlu0 %945
          %v947 = vmul.f32 %v943, %v934
          %v948 = vmul.f32 %v946, %v934
          %v949 = vadd.f32 %v947, 1e-12
          %v950 = vadd.f32 %v948, 1e-12
          %v951 = vrsqrt.pop %v949
          %v952 = vrsqrt.pop %v950
          %v953 = vmul.f32 %v937, %v951
          %v954 = vmul.f32 %v938, %v952
          %v956 = vlaneseq
          %v957 = vshrl.u32 %v956, 7
          %v958 = vsub.s32 0, %v957
          %v959 = vrot.slane %v925, %v958
          %v961 = vmul.f32 %v953, %v959
          %v962 = vmul.f32 %v954, %v959
          %v964 = vlaneseq
          %v965 = vshrl.u32 %v964, 7
          %v966 = vsub.s32 0, %v965
          %v967 = vrot.slane %v926, %v966
          %v969 = vadd.f32 %v961, %v967
          %v970 = vadd.f32 %v962, %v967
          %971 = vst.msk [vmem:[#allocation2] sm:$0xff] %vm927, %v969
          %972 = vst.msk [vmem:[#allocation2 + $0x8] sm:$0xff] %vm927, %v970
        $region100: #{tpu_custom_call.1} parent=95 // pred_fallthru
          _
        %v973 = vld [vmem:[#allocation2] sm:$0xff]
        %v974 = vld [vmem:[#allocation2 + $0x8] sm:$0xff]
        %v975 = vpack.c.bf16 %v974, %v973
        %v976 = vld [vmem:[%s777] sm:$0x1]
        %v977 = vld [vmem:[%s777 + $0x1] sm:$0x1]
        %v980 = vlaneseq
        %v981 = vshrl.u32 %v980, 7
        %v982 = vsub.s32 0, %v981
        %v983 = vrot.slane %v976, %v982
        %v984 = vlaneseq
        %v985 = vshrl.u32 %v984, 7
        %v986 = vsub.s32 0, %v985
        %v987 = vrot.slane %v977, %v986
        %v990 = vld [vmem:[%s783] sm:$0xff]
        %v991 = vld [vmem:[%s783 + $0x8] sm:$0xff]
        %v992 = vld [vmem:[%s783 + $0x10] sm:$0xff]
        %v993 = vld [vmem:[%s783 + $0x18] sm:$0xff]
        %v994 = vld [vmem:[%s783 + $0x20] sm:$0xff]
        %v995 = vld [vmem:[%s783 + $0x28] sm:$0xff]
        %v996 = vld [vmem:[%s787] sm:$0x3]
        %v998 = vlaneseq
        %v999 = vshrl.u32 %v998, 7
        %v1000 = vsub.s32 0, %v999
        %v1001 = vrot.slane %v996, %v1000
        %v1002 = vlaneseq
        %v1003 = vshrl.u32 %v1002, 7
        %v1004 = vsub.s32 1, %v1003
        %v1005 = vrot.slane %v996, %v1004
        %v1014 = vunpack.c.l.b16 %v990
        %v1015 = vunpack.c.h.b16 %v990
        %v1016 = vunpack.c.l.b16 %v991
        %v1017 = vunpack.c.h.b16 %v991
        %v1018 = vunpack.c.l.b16 %v992
        %v1019 = vunpack.c.h.b16 %v992
        %v1020 = vunpack.c.l.b16 %v993
        %v1021 = vunpack.c.h.b16 %v993
        %v1022 = vunpack.c.l.b16 %v994
        %v1023 = vunpack.c.h.b16 %v994
        %v1024 = vunpack.c.l.b16 %v995
        %v1025 = vunpack.c.h.b16 %v995
        %v1026 = vpack.c.b16 %v1016, %v1014
        %v1027 = vpack.c.b16 %v1017, %v1015
        %v1028 = vpack.c.b16 %v1020, %v1018
        %v1029 = vpack.c.b16 %v1021, %v1019
        %v1030 = vpack.c.b16 %v1024, %v1022
        %v1031 = vpack.c.b16 %v1025, %v1023
        %vm1038 = vcmask 392192
        %v1040 = vsel %vm1038, %v975, 0
        %1042 = vmatprep.subr.bf16.mxu0 %v1027
        %1043 = vmatpush1.bf16.msra.mxu0 %v1026
        %1044 = vmatprep.subr.bf16.mxu0 %v1029
        %1045 = vmatpush1.bf16.msra.mxu0 %v1028
        %1046 = vmatprep.subr.bf16.mxu0 %v1031
        %1047 = vmatpush1.bf16.msra.mxu0 %v1030
        %1048 = vmatprep.subr.bf16.mxu0 0
        %1049 = vmatpush1.bf16.msra.mxu0 0
        %1050 = vmatprep.subr.bf16.mxu0 0
        %1051 = vmatpush1.bf16.msra.mxu0 0
        %1052 = vmatprep.subr.bf16.mxu0 0
        %1053 = vmatpush1.bf16.msra.mxu0 0
        %1054 = vmatprep.subr.bf16.mxu0 0
        %1055 = vmatpush1.bf16.msra.mxu0 0
        %1056 = vmatprep.subr.bf16.mxu0 0
        %1057 = vmatpush1.bf16.msra.mxu0 0
        %1058 = vmatprep.subr.bf16.mxu0 0
        %1059 = vmatpush1.bf16.msra.mxu0 0
        %1060 = vmatprep.subr.bf16.mxu0 0
        %1061 = vmatpush1.bf16.msra.mxu0 0
        %1062 = vmatprep.subr.bf16.mxu0 0
        %1063 = vmatpush1.bf16.msra.mxu0 0
        %1064 = vmatprep.subr.bf16.mxu0 0
        %1065 = vmatpush1.bf16.msra.mxu0 0
        %1066 = vmatprep.subr.bf16.mxu0 0
        %1067 = vmatpush1.bf16.msra.mxu0 0
        %1068 = vmatprep.subr.bf16.mxu0 0
        %1069 = vmatpush1.bf16.msra.mxu0 0
        %1070 = vmatprep.subr.bf16.mxu0 0
        %1071 = vmatpush1.bf16.msra.mxu0 0
        %1072 = vmatprep.subr.bf16.mxu0 0
        %1073 = vmatpush1.bf16.msra.mxu0 0
        %1074 = vmatprep.mubr.bf16.mxu0 0
        %1075 = vmatmul.mubr.bf16.gmra.mrb[0].mxu0 %v1040
        %v1076 = vpop.f32.mrb[0].mxu0
        %v1077 = vadd.f32 %v1001, %v1076
        %v1078 = vpop.f32.mrb[0].mxu0
        %v1079 = vadd.f32 %v1005, %v1078
        %v1080 = vpop.f32.mrb[0].mxu0
        %v1081 = vadd.f32 %v1001, %v1080
        %v1082 = vpop.f32.mrb[0].mxu0
        %v1083 = vadd.f32 %v1005, %v1082
        %1084 = vdwg.mxu0
        %v1085 = vpack.c.bf16 %v1077, %v1077
        %v1086 = vpack.c.bf16 %v1081, %v1081
        %1088 = vrot.lane.b32.xlu0 %v1085, 80
        %v1089 = vpop.permute.xlu0 %1088
        %vm1090 = vcmask 97280
        %v1092 = vsel %vm1090, %v1085, 0
        %v1095 = vsel %vm1090, %v1089, 0
        %1097 = vmatprep.subr.bf16.mxu0 0
        %1098 = vmatpush1.bf16.xpose.msra.mxu0 %v1095
        %1099 = vmatprep.subr.bf16.mxu0 0
        %1100 = vmatpush1.bf16.xpose.msra.mxu0 0
        %1101 = vmatprep.subr.bf16.mxu0 0
        %1102 = vmatpush1.bf16.xpose.msra.mxu0 0
        %1103 = vmatprep.subr.bf16.mxu0 0
        %1104 = vmatpush1.bf16.xpose.msra.mxu0 0
        %1105 = vmatprep.subr.bf16.mxu0 0
        %1106 = vmatpush1.bf16.xpose.msra.mxu0 0
        %1107 = vmatprep.subr.bf16.mxu0 0
        %1108 = vmatpush1.bf16.xpose.msra.mxu0 0
        %1109 = vmatprep.subr.bf16.mxu0 0
        %1110 = vmatpush1.bf16.xpose.msra.mxu0 0
        %1111 = vmatprep.subr.bf16.mxu0 0
        %1112 = vmatpush1.bf16.xpose.msra.mxu0 0
        %1113 = vmatprep.subr.bf16.mxu0 0
        %1114 = vmatpush1.bf16.xpose.msra.mxu0 0
        %1115 = vmatprep.subr.bf16.mxu0 0
        %1116 = vmatpush1.bf16.xpose.msra.mxu0 0
        %1117 = vmatprep.subr.bf16.mxu0 0
        %1118 = vmatpush1.bf16.xpose.msra.mxu0 0
        %1119 = vmatprep.subr.bf16.mxu0 0
        %1120 = vmatpush1.bf16.xpose.msra.mxu0 0
        %1121 = vmatprep.subr.bf16.mxu0 0
        %1122 = vmatpush1.bf16.xpose.msra.mxu0 0
        %1123 = vmatprep.subr.bf16.mxu0 0
        %1124 = vmatpush1.bf16.xpose.msra.mxu0 0
        %1125 = vmatprep.subr.bf16.mxu0 0
        %1126 = vmatpush1.bf16.xpose.msra.mxu0 0
        %1127 = vmatprep.subr.bf16.mxu0 0
        %1128 = vmatpush1.bf16.xpose.msra.mxu0 0
        %1129 = vmatprep.mubr.bf16.mxu0 0
        %1130 = vmatmul.mubr.bf16.gmra.mrb[0].mxu0 %v1092
        %v1131 = vpop.f32.mrb[0].mxu0
        %v1132 = vadd.f32 %v983, %v1131
        %v1133 = vpop.f32.mrb[0].mxu0
        %v1134 = vpop.f32.mrb[0].mxu0
        %v1135 = vpop.f32.mrb[0].mxu0
        %1136 = vdwg.mxu0
        %1138 = vrot.lane.b32.xlu0 %v1086, 80
        %v1139 = vpop.permute.xlu0 %1138
        %v1141 = vsel %vm1090, %v1086, 0
        %v1144 = vsel %vm1090, %v1139, 0
        %1146 = vmatprep.subr.bf16.mxu0 0
        %1147 = vmatpush1.bf16.xpose.msra.mxu0 %v1144
        %1148 = vmatprep.subr.bf16.mxu0 0
        %1149 = vmatpush1.bf16.xpose.msra.mxu0 0
        %1150 = vmatprep.subr.bf16.mxu0 0
        %1151 = vmatpush1.bf16.xpose.msra.mxu0 0
        %1152 = vmatprep.subr.bf16.mxu0 0
        %1153 = vmatpush1.bf16.xpose.msra.mxu0 0
        %1154 = vmatprep.subr.bf16.mxu0 0
        %1155 = vmatpush1.bf16.xpose.msra.mxu0 0
        %1156 = vmatprep.subr.bf16.mxu0 0
        %1157 = vmatpush1.bf16.xpose.msra.mxu0 0
        %1158 = vmatprep.subr.bf16.mxu0 0
        %1159 = vmatpush1.bf16.xpose.msra.mxu0 0
        %1160 = vmatprep.subr.bf16.mxu0 0
        %1161 = vmatpush1.bf16.xpose.msra.mxu0 0
        %1162 = vmatprep.subr.bf16.mxu0 0
        %1163 = vmatpush1.bf16.xpose.msra.mxu0 0
        %1164 = vmatprep.subr.bf16.mxu0 0
        %1165 = vmatpush1.bf16.xpose.msra.mxu0 0
        %1166 = vmatprep.subr.bf16.mxu0 0
        %1167 = vmatpush1.bf16.xpose.msra.mxu0 0
        %1168 = vmatprep.subr.bf16.mxu0 0
        %1169 = vmatpush1.bf16.xpose.msra.mxu0 0
        %1170 = vmatprep.subr.bf16.mxu0 0
        %1171 = vmatpush1.bf16.xpose.msra.mxu0 0
        %1172 = vmatprep.subr.bf16.mxu0 0
        %1173 = vmatpush1.bf16.xpose.msra.mxu0 0
        %1174 = vmatprep.subr.bf16.mxu0 0
        %1175 = vmatpush1.bf16.xpose.msra.mxu0 0
        %1176 = vmatprep.subr.bf16.mxu0 0
        %1177 = vmatpush1.bf16.xpose.msra.mxu0 0
        %1178 = vmatprep.mubr.bf16.mxu0 0
        %1179 = vmatmul.mubr.bf16.gmra.mrb[0].mxu0 %v1141
        %v1180 = vpop.f32.mrb[0].mxu0
        %v1181 = vadd.f32 %v987, %v1180
        %v1182 = vpop.f32.mrb[0].mxu0
        %v1183 = vpop.f32.mrb[0].mxu0
        %v1184 = vpop.f32.mrb[0].mxu0
        %1185 = vdwg.mxu0
        %vm1186 = vcmask 64512
        %v1187 = vsel %vm1186, %v1132, -inf
        %1188 = vmax.xlane.f32.xlu0 %v1187
        %v1189 = vpop.xlane.xlu0 %1188
        %v1190 = vsel %vm1186, %v1181, -inf
        %1191 = vmax.xlane.f32.xlu0 %v1190
        %v1192 = vpop.xlane.xlu0 %1191
        %v1193 = vsub.f32 %v1132, %v1189
        %v1194 = vsub.f32 %v1181, %v1192
        %v1195 = vmul.f32 %v1193, 1.442695
        %v1196 = vpow.pop %v1195
        %v1197 = vmul.f32 %v1194, 1.442695
        %v1198 = vpow.pop %v1197
        %v1199 = vsel %vm1186, %v1196, 0.0
        %1200 = vadd.xlane.f32.xlu0 %v1199
        %v1201 = vpop.xlane.xlu0 %1200
        %v1202 = vsel %vm1186, %v1198, 0.0
        %1203 = vadd.xlane.f32.xlu0 %v1202
        %v1204 = vpop.xlane.xlu0 %1203
        %v1205 = vrcp.pop %v1201
        %v1206 = vrcp.pop %v1204
        %v1207 = vmul.f32 %v1196, %v1205
        %v1208 = vmul.f32 %v1198, %v1206
        %v1209 = vpack.c.bf16 %v1207, %v1207
        %v1210 = vpack.c.bf16 %v1208, %v1208
        %1211 = vrot.lane.b32.xlu0 %v1085, 32
        %v1212 = vpop.permute.xlu0 %1211
        %v1214 = vsel %vm1186, %v1209, 0
        %vm1216 = vcmask 1043456
        %v1218 = vsel %vm1216, %v1212, 0
        %1220 = vmatprep.subr.bf16.mxu0 0
        %1221 = vmatpush1.bf16.msra.mxu0 %v1218
        %1222 = vmatprep.subr.bf16.mxu0 0
        %1223 = vmatpush1.bf16.msra.mxu0 0
        %1224 = vmatprep.subr.bf16.mxu0 0
        %1225 = vmatpush1.bf16.msra.mxu0 0
        %1226 = vmatprep.subr.bf16.mxu0 0
        %1227 = vmatpush1.bf16.msra.mxu0 0
        %1228 = vmatprep.subr.bf16.mxu0 0
        %1229 = vmatpush1.bf16.msra.mxu0 0
        %1230 = vmatprep.subr.bf16.mxu0 0
        %1231 = vmatpush1.bf16.msra.mxu0 0
        %1232 = vmatprep.subr.bf16.mxu0 0
        %1233 = vmatpush1.bf16.msra.mxu0 0
        %1234 = vmatprep.subr.bf16.mxu0 0
        %1235 = vmatpush1.bf16.msra.mxu0 0
        %1236 = vmatprep.subr.bf16.mxu0 0
        %1237 = vmatpush1.bf16.msra.mxu0 0
        %1238 = vmatprep.subr.bf16.mxu0 0
        %1239 = vmatpush1.bf16.msra.mxu0 0
        %1240 = vmatprep.subr.bf16.mxu0 0
        %1241 = vmatpush1.bf16.msra.mxu0 0
        %1242 = vmatprep.subr.bf16.mxu0 0
        %1243 = vmatpush1.bf16.msra.mxu0 0
        %1244 = vmatprep.subr.bf16.mxu0 0
        %1245 = vmatpush1.bf16.msra.mxu0 0
        %1246 = vmatprep.subr.bf16.mxu0 0
        %1247 = vmatpush1.bf16.msra.mxu0 0
        %1248 = vmatprep.subr.bf16.mxu0 0
        %1249 = vmatpush1.bf16.msra.mxu0 0
        %1250 = vmatprep.subr.bf16.mxu0 0
        %1251 = vmatpush1.bf16.msra.mxu0 0
        %1252 = vmatprep.mubr.bf16.mxu0 0
        %1253 = vmatmul.mubr.bf16.gmra.mrb[0].mxu0 %v1214
        %v1254 = vpop.f32.mrb[0].mxu0
        %v1255 = vadd.f32 0.0, %v1254
        %v1256 = vpop.f32.mrb[0].mxu0
        %v1257 = vpop.f32.mrb[0].mxu0
        %v1258 = vpop.f32.mrb[0].mxu0
        %1259 = vdwg.mxu0
        %1260 = vrot.lane.b32.xlu0 %v1086, 32
        %v1261 = vpop.permute.xlu0 %1260
        %v1263 = vsel %vm1186, %v1210, 0
        %v1266 = vsel %vm1216, %v1261, 0
        %1268 = vmatprep.subr.bf16.mxu0 0
        %1269 = vmatpush1.bf16.msra.mxu0 %v1266
        %1270 = vmatprep.subr.bf16.mxu0 0
        %1271 = vmatpush1.bf16.msra.mxu0 0
        %1272 = vmatprep.subr.bf16.mxu0 0
        %1273 = vmatpush1.bf16.msra.mxu0 0
        %1274 = vmatprep.subr.bf16.mxu0 0
        %1275 = vmatpush1.bf16.msra.mxu0 0
        %1276 = vmatprep.subr.bf16.mxu0 0
        %1277 = vmatpush1.bf16.msra.mxu0 0
        %1278 = vmatprep.subr.bf16.mxu0 0
        %1279 = vmatpush1.bf16.msra.mxu0 0
        %1280 = vmatprep.subr.bf16.mxu0 0
        %1281 = vmatpush1.bf16.msra.mxu0 0
        %1282 = vmatprep.subr.bf16.mxu0 0
        %1283 = vmatpush1.bf16.msra.mxu0 0
        %1284 = vmatprep.subr.bf16.mxu0 0
        %1285 = vmatpush1.bf16.msra.mxu0 0
        %1286 = vmatprep.subr.bf16.mxu0 0
        %1287 = vmatpush1.bf16.msra.mxu0 0
        %1288 = vmatprep.subr.bf16.mxu0 0
        %1289 = vmatpush1.bf16.msra.mxu0 0
        %1290 = vmatprep.subr.bf16.mxu0 0
        %1291 = vmatpush1.bf16.msra.mxu0 0
        %1292 = vmatprep.subr.bf16.mxu0 0
        %1293 = vmatpush1.bf16.msra.mxu0 0
        %1294 = vmatprep.subr.bf16.mxu0 0
        %1295 = vmatpush1.bf16.msra.mxu0 0
        %1296 = vmatprep.subr.bf16.mxu0 0
        %1297 = vmatpush1.bf16.msra.mxu0 0
        %1298 = vmatprep.subr.bf16.mxu0 0
        %1299 = vmatpush1.bf16.msra.mxu0 0
        %1300 = vmatprep.mubr.bf16.mxu0 0
        %1301 = vmatmul.mubr.bf16.gmra.mrb[0].mxu0 %v1263
        %v1302 = vpop.f32.mrb[0].mxu0
        %v1303 = vadd.f32 0.0, %v1302
        %v1304 = vpop.f32.mrb[0].mxu0
        %v1305 = vpop.f32.mrb[0].mxu0
        %v1306 = vpop.f32.mrb[0].mxu0
        %1307 = vdwg.mxu0
        %1308 = vrot.lane.b32.xlu0 %v1085, 116
        %v1309 = vpop.permute.xlu0 %1308
        %1310 = vrot.lane.b32.xlu0 %v1085, 68
        %v1311 = vpop.permute.xlu0 %1310
        %v1313 = vsel %vm1090, %v1309, 0
        %v1316 = vsel %vm1090, %v1311, 0
        %1318 = vmatprep.subr.bf16.mxu0 0
        %1319 = vmatpush1.bf16.xpose.msra.mxu0 %v1316
        %1320 = vmatprep.subr.bf16.mxu0 0
        %1321 = vmatpush1.bf16.xpose.msra.mxu0 0
        %1322 = vmatprep.subr.bf16.mxu0 0
        %1323 = vmatpush1.bf16.xpose.msra.mxu0 0
        %1324 = vmatprep.subr.bf16.mxu0 0
        %1325 = vmatpush1.bf16.xpose.msra.mxu0 0
        %1326 = vmatprep.subr.bf16.mxu0 0
        %1327 = vmatpush1.bf16.xpose.msra.mxu0 0
        %1328 = vmatprep.subr.bf16.mxu0 0
        %1329 = vmatpush1.bf16.xpose.msra.mxu0 0
        %1330 = vmatprep.subr.bf16.mxu0 0
        %1331 = vmatpush1.bf16.xpose.msra.mxu0 0
        %1332 = vmatprep.subr.bf16.mxu0 0
        %1333 = vmatpush1.bf16.xpose.msra.mxu0 0
        %1334 = vmatprep.subr.bf16.mxu0 0
        %1335 = vmatpush1.bf16.xpose.msra.mxu0 0
        %1336 = vmatprep.subr.bf16.mxu0 0
        %1337 = vmatpush1.bf16.xpose.msra.mxu0 0
        %1338 = vmatprep.subr.bf16.mxu0 0
        %1339 = vmatpush1.bf16.xpose.msra.mxu0 0
        %1340 = vmatprep.subr.bf16.mxu0 0
        %1341 = vmatpush1.bf16.xpose.msra.mxu0 0
        %1342 = vmatprep.subr.bf16.mxu0 0
        %1343 = vmatpush1.bf16.xpose.msra.mxu0 0
        %1344 = vmatprep.subr.bf16.mxu0 0
        %1345 = vmatpush1.bf16.xpose.msra.mxu0 0
        %1346 = vmatprep.subr.bf16.mxu0 0
        %1347 = vmatpush1.bf16.xpose.msra.mxu0 0
        %1348 = vmatprep.subr.bf16.mxu0 0
        %1349 = vmatpush1.bf16.xpose.msra.mxu0 0
        %1350 = vmatprep.mubr.bf16.mxu0 0
        %1351 = vmatmul.mubr.bf16.gmra.mrb[0].mxu0 %v1313
        %v1352 = vpop.f32.mrb[0].mxu0
        %v1353 = vadd.f32 %v983, %v1352
        %v1354 = vpop.f32.mrb[0].mxu0
        %v1355 = vpop.f32.mrb[0].mxu0
        %v1356 = vpop.f32.mrb[0].mxu0
        %1357 = vdwg.mxu0
        %1358 = vrot.lane.b32.xlu0 %v1086, 116
        %v1359 = vpop.permute.xlu0 %1358
        %1360 = vrot.lane.b32.xlu0 %v1086, 68
        %v1361 = vpop.permute.xlu0 %1360
        %v1363 = vsel %vm1090, %v1359, 0
        %v1366 = vsel %vm1090, %v1361, 0
        %1368 = vmatprep.subr.bf16.mxu0 0
        %1369 = vmatpush1.bf16.xpose.msra.mxu0 %v1366
        %1370 = vmatprep.subr.bf16.mxu0 0
        %1371 = vmatpush1.bf16.xpose.msra.mxu0 0
        %1372 = vmatprep.subr.bf16.mxu0 0
        %1373 = vmatpush1.bf16.xpose.msra.mxu0 0
        %1374 = vmatprep.subr.bf16.mxu0 0
        %1375 = vmatpush1.bf16.xpose.msra.mxu0 0
        %1376 = vmatprep.subr.bf16.mxu0 0
        %1377 = vmatpush1.bf16.xpose.msra.mxu0 0
        %1378 = vmatprep.subr.bf16.mxu0 0
        %1379 = vmatpush1.bf16.xpose.msra.mxu0 0
        %1380 = vmatprep.subr.bf16.mxu0 0
        %1381 = vmatpush1.bf16.xpose.msra.mxu0 0
        %1382 = vmatprep.subr.bf16.mxu0 0
        %1383 = vmatpush1.bf16.xpose.msra.mxu0 0
        %1384 = vmatprep.subr.bf16.mxu0 0
        %1385 = vmatpush1.bf16.xpose.msra.mxu0 0
        %1386 = vmatprep.subr.bf16.mxu0 0
        %1387 = vmatpush1.bf16.xpose.msra.mxu0 0
        %1388 = vmatprep.subr.bf16.mxu0 0
        %1389 = vmatpush1.bf16.xpose.msra.mxu0 0
        %1390 = vmatprep.subr.bf16.mxu0 0
        %1391 = vmatpush1.bf16.xpose.msra.mxu0 0
        %1392 = vmatprep.subr.bf16.mxu0 0
        %1393 = vmatpush1.bf16.xpose.msra.mxu0 0
        %1394 = vmatprep.subr.bf16.mxu0 0
        %1395 = vmatpush1.bf16.xpose.msra.mxu0 0
        %1396 = vmatprep.subr.bf16.mxu0 0
        %1397 = vmatpush1.bf16.xpose.msra.mxu0 0
        %1398 = vmatprep.subr.bf16.mxu0 0
        %1399 = vmatpush1.bf16.xpose.msra.mxu0 0
        %1400 = vmatprep.mubr.bf16.mxu0 0
        %1401 = vmatmul.mubr.bf16.gmra.mrb[0].mxu0 %v1363
        %v1402 = vpop.f32.mrb[0].mxu0
        %v1403 = vadd.f32 %v987, %v1402
        %v1404 = vpop.f32.mrb[0].mxu0
        %v1405 = vpop.f32.mrb[0].mxu0
        %v1406 = vpop.f32.mrb[0].mxu0
        %1407 = vdwg.mxu0
        %v1408 = vsel %vm1186, %v1353, -inf
        %1409 = vmax.xlane.f32.xlu0 %v1408
        %v1410 = vpop.xlane.xlu0 %1409
        %v1411 = vsel %vm1186, %v1403, -inf
        %1412 = vmax.xlane.f32.xlu0 %v1411
        %v1413 = vpop.xlane.xlu0 %1412
        %v1414 = vsub.f32 %v1353, %v1410
        %v1415 = vsub.f32 %v1403, %v1413
        %v1416 = vmul.f32 %v1414, 1.442695
        %v1417 = vpow.pop %v1416
        %v1418 = vmul.f32 %v1415, 1.442695
        %v1419 = vpow.pop %v1418
        %v1420 = vsel %vm1186, %v1417, 0.0
        %1421 = vadd.xlane.f32.xlu0 %v1420
        %v1422 = vpop.xlane.xlu0 %1421
        %v1423 = vsel %vm1186, %v1419, 0.0
        %1424 = vadd.xlane.f32.xlu0 %v1423
        %v1425 = vpop.xlane.xlu0 %1424
        %v1426 = vrcp.pop %v1422
        %v1427 = vrcp.pop %v1425
        %v1428 = vmul.f32 %v1417, %v1426
        %v1429 = vmul.f32 %v1419, %v1427
        %v1430 = vpack.c.bf16 %v1428, %v1428
        %v1431 = vpack.c.bf16 %v1429, %v1429
        %1432 = vrot.lane.b32.xlu0 %v1085, 20
        %v1433 = vpop.permute.xlu0 %1432
        %v1435 = vsel %vm1186, %v1430, 0
        %v1438 = vsel %vm1216, %v1433, 0
        %1440 = vmatprep.subr.bf16.mxu0 0
        %1441 = vmatpush1.bf16.msra.mxu0 %v1438
        %1442 = vmatprep.subr.bf16.mxu0 0
        %1443 = vmatpush1.bf16.msra.mxu0 0
        %1444 = vmatprep.subr.bf16.mxu0 0
        %1445 = vmatpush1.bf16.msra.mxu0 0
        %1446 = vmatprep.subr.bf16.mxu0 0
        %1447 = vmatpush1.bf16.msra.mxu0 0
        %1448 = vmatprep.subr.bf16.mxu0 0
        %1449 = vmatpush1.bf16.msra.mxu0 0
        %1450 = vmatprep.subr.bf16.mxu0 0
        %1451 = vmatpush1.bf16.msra.mxu0 0
        %1452 = vmatprep.subr.bf16.mxu0 0
        %1453 = vmatpush1.bf16.msra.mxu0 0
        %1454 = vmatprep.subr.bf16.mxu0 0
        %1455 = vmatpush1.bf16.msra.mxu0 0
        %1456 = vmatprep.subr.bf16.mxu0 0
        %1457 = vmatpush1.bf16.msra.mxu0 0
        %1458 = vmatprep.subr.bf16.mxu0 0
        %1459 = vmatpush1.bf16.msra.mxu0 0
        %1460 = vmatprep.subr.bf16.mxu0 0
        %1461 = vmatpush1.bf16.msra.mxu0 0
        %1462 = vmatprep.subr.bf16.mxu0 0
        %1463 = vmatpush1.bf16.msra.mxu0 0
        %1464 = vmatprep.subr.bf16.mxu0 0
        %1465 = vmatpush1.bf16.msra.mxu0 0
        %1466 = vmatprep.subr.bf16.mxu0 0
        %1467 = vmatpush1.bf16.msra.mxu0 0
        %1468 = vmatprep.subr.bf16.mxu0 0
        %1469 = vmatpush1.bf16.msra.mxu0 0
        %1470 = vmatprep.subr.bf16.mxu0 0
        %1471 = vmatpush1.bf16.msra.mxu0 0
        %1472 = vmatprep.mubr.bf16.mxu0 0
        %1473 = vmatmul.mubr.bf16.gmra.mrb[0].mxu0 %v1435
        %v1474 = vpop.f32.mrb[0].mxu0
        %v1475 = vadd.f32 0.0, %v1474
        %v1476 = vpop.f32.mrb[0].mxu0
        %v1477 = vpop.f32.mrb[0].mxu0
        %v1478 = vpop.f32.mrb[0].mxu0
        %1479 = vdwg.mxu0
        %1480 = vrot.lane.b32.xlu0 %v1086, 20
        %v1481 = vpop.permute.xlu0 %1480
        %v1483 = vsel %vm1186, %v1431, 0
        %v1486 = vsel %vm1216, %v1481, 0
        %1488 = vmatprep.subr.bf16.mxu0 0
        %1489 = vmatpush1.bf16.msra.mxu0 %v1486
        %1490 = vmatprep.subr.bf16.mxu0 0
        %1491 = vmatpush1.bf16.msra.mxu0 0
        %1492 = vmatprep.subr.bf16.mxu0 0
        %1493 = vmatpush1.bf16.msra.mxu0 0
        %1494 = vmatprep.subr.bf16.mxu0 0
        %1495 = vmatpush1.bf16.msra.mxu0 0
        %1496 = vmatprep.subr.bf16.mxu0 0
        %1497 = vmatpush1.bf16.msra.mxu0 0
        %1498 = vmatprep.subr.bf16.mxu0 0
        %1499 = vmatpush1.bf16.msra.mxu0 0
        %1500 = vmatprep.subr.bf16.mxu0 0
        %1501 = vmatpush1.bf16.msra.mxu0 0
        %1502 = vmatprep.subr.bf16.mxu0 0
        %1503 = vmatpush1.bf16.msra.mxu0 0
        %1504 = vmatprep.subr.bf16.mxu0 0
        %1505 = vmatpush1.bf16.msra.mxu0 0
        %1506 = vmatprep.subr.bf16.mxu0 0
        %1507 = vmatpush1.bf16.msra.mxu0 0
        %1508 = vmatprep.subr.bf16.mxu0 0
        %1509 = vmatpush1.bf16.msra.mxu0 0
        %1510 = vmatprep.subr.bf16.mxu0 0
        %1511 = vmatpush1.bf16.msra.mxu0 0
        %1512 = vmatprep.subr.bf16.mxu0 0
        %1513 = vmatpush1.bf16.msra.mxu0 0
        %1514 = vmatprep.subr.bf16.mxu0 0
        %1515 = vmatpush1.bf16.msra.mxu0 0
        %1516 = vmatprep.subr.bf16.mxu0 0
        %1517 = vmatpush1.bf16.msra.mxu0 0
        %1518 = vmatprep.subr.bf16.mxu0 0
        %1519 = vmatpush1.bf16.msra.mxu0 0
        %1520 = vmatprep.mubr.bf16.mxu0 0
        %1521 = vmatmul.mubr.bf16.gmra.mrb[0].mxu0 %v1483
        %v1522 = vpop.f32.mrb[0].mxu0
        %v1523 = vadd.f32 0.0, %v1522
        %v1524 = vpop.f32.mrb[0].mxu0
        %v1525 = vpop.f32.mrb[0].mxu0
        %v1526 = vpop.f32.mrb[0].mxu0
        %1527 = vdwg.mxu0
        %v1528 = vpack.c.bf16 %v1079, %v1079
        %v1529 = vpack.c.bf16 %v1083, %v1083
        %1530 = vrot.lane.b32.xlu0 %v1085, 104
        %v1531 = vpop.permute.xlu0 %1530
        %1532 = vrot.lane.b32.xlu0 %v1085, 56
        %v1533 = vpop.permute.xlu0 %1532
        %v1535 = vsel %vm1090, %v1531, 0
        %v1538 = vsel %vm1090, %v1533, 0
        %1540 = vmatprep.subr.bf16.mxu0 0
        %1541 = vmatpush1.bf16.xpose.msra.mxu0 %v1538
        %1542 = vmatprep.subr.bf16.mxu0 0
        %1543 = vmatpush1.bf16.xpose.msra.mxu0 0
        %1544 = vmatprep.subr.bf16.mxu0 0
        %1545 = vmatpush1.bf16.xpose.msra.mxu0 0
        %1546 = vmatprep.subr.bf16.mxu0 0
        %1547 = vmatpush1.bf16.xpose.msra.mxu0 0
        %1548 = vmatprep.subr.bf16.mxu0 0
        %1549 = vmatpush1.bf16.xpose.msra.mxu0 0
        %1550 = vmatprep.subr.bf16.mxu0 0
        %1551 = vmatpush1.bf16.xpose.msra.mxu0 0
        %1552 = vmatprep.subr.bf16.mxu0 0
        %1553 = vmatpush1.bf16.xpose.msra.mxu0 0
        %1554 = vmatprep.subr.bf16.mxu0 0
        %1555 = vmatpush1.bf16.xpose.msra.mxu0 0
        %1556 = vmatprep.subr.bf16.mxu0 0
        %1557 = vmatpush1.bf16.xpose.msra.mxu0 0
        %1558 = vmatprep.subr.bf16.mxu0 0
        %1559 = vmatpush1.bf16.xpose.msra.mxu0 0
        %1560 = vmatprep.subr.bf16.mxu0 0
        %1561 = vmatpush1.bf16.xpose.msra.mxu0 0
        %1562 = vmatprep.subr.bf16.mxu0 0
        %1563 = vmatpush1.bf16.xpose.msra.mxu0 0
        %1564 = vmatprep.subr.bf16.mxu0 0
        %1565 = vmatpush1.bf16.xpose.msra.mxu0 0
        %1566 = vmatprep.subr.bf16.mxu0 0
        %1567 = vmatpush1.bf16.xpose.msra.mxu0 0
        %1568 = vmatprep.subr.bf16.mxu0 0
        %1569 = vmatpush1.bf16.xpose.msra.mxu0 0
        %1570 = vmatprep.subr.bf16.mxu0 0
        %1571 = vmatpush1.bf16.xpose.msra.mxu0 0
        %1572 = vmatprep.mubr.bf16.mxu0 0
        %1573 = vmatmul.mubr.bf16.gmra.mrb[0].mxu0 %v1535
        %v1574 = vpop.f32.mrb[0].mxu0
        %v1575 = vadd.f32 %v983, %v1574
        %v1576 = vpop.f32.mrb[0].mxu0
        %v1577 = vpop.f32.mrb[0].mxu0
        %v1578 = vpop.f32.mrb[0].mxu0
        %1579 = vdwg.mxu0
        %1580 = vrot.lane.b32.xlu0 %v1086, 104
        %v1581 = vpop.permute.xlu0 %1580
        %1582 = vrot.lane.b32.xlu0 %v1086, 56
        %v1583 = vpop.permute.xlu0 %1582
        %v1585 = vsel %vm1090, %v1581, 0
        %v1588 = vsel %vm1090, %v1583, 0
        %1590 = vmatprep.subr.bf16.mxu0 0
        %1591 = vmatpush1.bf16.xpose.msra.mxu0 %v1588
        %1592 = vmatprep.subr.bf16.mxu0 0
        %1593 = vmatpush1.bf16.xpose.msra.mxu0 0
        %1594 = vmatprep.subr.bf16.mxu0 0
        %1595 = vmatpush1.bf16.xpose.msra.mxu0 0
        %1596 = vmatprep.subr.bf16.mxu0 0
        %1597 = vmatpush1.bf16.xpose.msra.mxu0 0
        %1598 = vmatprep.subr.bf16.mxu0 0
        %1599 = vmatpush1.bf16.xpose.msra.mxu0 0
        %1600 = vmatprep.subr.bf16.mxu0 0
        %1601 = vmatpush1.bf16.xpose.msra.mxu0 0
        %1602 = vmatprep.subr.bf16.mxu0 0
        %1603 = vmatpush1.bf16.xpose.msra.mxu0 0
        %1604 = vmatprep.subr.bf16.mxu0 0
        %1605 = vmatpush1.bf16.xpose.msra.mxu0 0
        %1606 = vmatprep.subr.bf16.mxu0 0
        %1607 = vmatpush1.bf16.xpose.msra.mxu0 0
        %1608 = vmatprep.subr.bf16.mxu0 0
        %1609 = vmatpush1.bf16.xpose.msra.mxu0 0
        %1610 = vmatprep.subr.bf16.mxu0 0
        %1611 = vmatpush1.bf16.xpose.msra.mxu0 0
        %1612 = vmatprep.subr.bf16.mxu0 0
        %1613 = vmatpush1.bf16.xpose.msra.mxu0 0
        %1614 = vmatprep.subr.bf16.mxu0 0
        %1615 = vmatpush1.bf16.xpose.msra.mxu0 0
        %1616 = vmatprep.subr.bf16.mxu0 0
        %1617 = vmatpush1.bf16.xpose.msra.mxu0 0
        %1618 = vmatprep.subr.bf16.mxu0 0
        %1619 = vmatpush1.bf16.xpose.msra.mxu0 0
        %1620 = vmatprep.subr.bf16.mxu0 0
        %1621 = vmatpush1.bf16.xpose.msra.mxu0 0
        %1622 = vmatprep.mubr.bf16.mxu0 0
        %1623 = vmatmul.mubr.bf16.gmra.mrb[0].mxu0 %v1585
        %v1624 = vpop.f32.mrb[0].mxu0
        %v1625 = vadd.f32 %v987, %v1624
        %v1626 = vpop.f32.mrb[0].mxu0
        %v1627 = vpop.f32.mrb[0].mxu0
        %v1628 = vpop.f32.mrb[0].mxu0
        %1629 = vdwg.mxu0
        %v1630 = vsel %vm1186, %v1575, -inf
        %1631 = vmax.xlane.f32.xlu0 %v1630
        %v1632 = vpop.xlane.xlu0 %1631
        %v1633 = vsel %vm1186, %v1625, -inf
        %1634 = vmax.xlane.f32.xlu0 %v1633
        %v1635 = vpop.xlane.xlu0 %1634
        %v1636 = vsub.f32 %v1575, %v1632
        %v1637 = vsub.f32 %v1625, %v1635
        %v1638 = vmul.f32 %v1636, 1.442695
        %v1639 = vpow.pop %v1638
        %v1640 = vmul.f32 %v1637, 1.442695
        %v1641 = vpow.pop %v1640
        %v1642 = vsel %vm1186, %v1639, 0.0
        %1643 = vadd.xlane.f32.xlu0 %v1642
        %v1644 = vpop.xlane.xlu0 %1643
        %v1645 = vsel %vm1186, %v1641, 0.0
        %1646 = vadd.xlane.f32.xlu0 %v1645
        %v1647 = vpop.xlane.xlu0 %1646
        %v1648 = vrcp.pop %v1644
        %v1649 = vrcp.pop %v1647
        %v1650 = vmul.f32 %v1639, %v1648
        %v1651 = vmul.f32 %v1641, %v1649
        %v1652 = vpack.c.bf16 %v1650, %v1650
        %v1653 = vpack.c.bf16 %v1651, %v1651
        %1655 = vrot.lane.b32.xlu0 %v1085, 8
        %v1656 = vpop.permute.xlu0 %1655
        %1657 = vrot.lane.b32.xlu0 %v1528, 8
        %v1658 = vpop.permute.xlu0 %1657
        %vm1659 = vcmask 64512
        %v1660 = vsel %vm1659, %v1656, %v1658
        %v1662 = vsel %vm1186, %v1652, 0
        %v1665 = vsel %vm1216, %v1660, 0
        %1667 = vmatprep.subr.bf16.mxu0 0
        %1668 = vmatpush1.bf16.msra.mxu0 %v1665
        %1669 = vmatprep.subr.bf16.mxu0 0
        %1670 = vmatpush1.bf16.msra.mxu0 0
        %1671 = vmatprep.subr.bf16.mxu0 0
        %1672 = vmatpush1.bf16.msra.mxu0 0
        %1673 = vmatprep.subr.bf16.mxu0 0
        %1674 = vmatpush1.bf16.msra.mxu0 0
        %1675 = vmatprep.subr.bf16.mxu0 0
        %1676 = vmatpush1.bf16.msra.mxu0 0
        %1677 = vmatprep.subr.bf16.mxu0 0
        %1678 = vmatpush1.bf16.msra.mxu0 0
        %1679 = vmatprep.subr.bf16.mxu0 0
        %1680 = vmatpush1.bf16.msra.mxu0 0
        %1681 = vmatprep.subr.bf16.mxu0 0
        %1682 = vmatpush1.bf16.msra.mxu0 0
        %1683 = vmatprep.subr.bf16.mxu0 0
        %1684 = vmatpush1.bf16.msra.mxu0 0
        %1685 = vmatprep.subr.bf16.mxu0 0
        %1686 = vmatpush1.bf16.msra.mxu0 0
        %1687 = vmatprep.subr.bf16.mxu0 0
        %1688 = vmatpush1.bf16.msra.mxu0 0
        %1689 = vmatprep.subr.bf16.mxu0 0
        %1690 = vmatpush1.bf16.msra.mxu0 0
        %1691 = vmatprep.subr.bf16.mxu0 0
        %1692 = vmatpush1.bf16.msra.mxu0 0
        %1693 = vmatprep.subr.bf16.mxu0 0
        %1694 = vmatpush1.bf16.msra.mxu0 0
        %1695 = vmatprep.subr.bf16.mxu0 0
        %1696 = vmatpush1.bf16.msra.mxu0 0
        %1697 = vmatprep.subr.bf16.mxu0 0
        %1698 = vmatpush1.bf16.msra.mxu0 0
        %1699 = vmatprep.mubr.bf16.mxu0 0
        %1700 = vmatmul.mubr.bf16.gmra.mrb[0].mxu0 %v1662
        %v1701 = vpop.f32.mrb[0].mxu0
        %v1702 = vadd.f32 0.0, %v1701
        %v1703 = vpop.f32.mrb[0].mxu0
        %v1704 = vpop.f32.mrb[0].mxu0
        %v1705 = vpop.f32.mrb[0].mxu0
        %1706 = vdwg.mxu0
        %1708 = vrot.lane.b32.xlu0 %v1086, 8
        %v1709 = vpop.permute.xlu0 %1708
        %1710 = vrot.lane.b32.xlu0 %v1529, 8
        %v1711 = vpop.permute.xlu0 %1710
        %v1712 = vsel %vm1659, %v1709, %v1711
        %v1714 = vsel %vm1186, %v1653, 0
        %v1717 = vsel %vm1216, %v1712, 0
        %1719 = vmatprep.subr.bf16.mxu0 0
        %1720 = vmatpush1.bf16.msra.mxu0 %v1717
        %1721 = vmatprep.subr.bf16.mxu0 0
        %1722 = vmatpush1.bf16.msra.mxu0 0
        %1723 = vmatprep.subr.bf16.mxu0 0
        %1724 = vmatpush1.bf16.msra.mxu0 0
        %1725 = vmatprep.subr.bf16.mxu0 0
        %1726 = vmatpush1.bf16.msra.mxu0 0
        %1727 = vmatprep.subr.bf16.mxu0 0
        %1728 = vmatpush1.bf16.msra.mxu0 0
        %1729 = vmatprep.subr.bf16.mxu0 0
        %1730 = vmatpush1.bf16.msra.mxu0 0
        %1731 = vmatprep.subr.bf16.mxu0 0
        %1732 = vmatpush1.bf16.msra.mxu0 0
        %1733 = vmatprep.subr.bf16.mxu0 0
        %1734 = vmatpush1.bf16.msra.mxu0 0
        %1735 = vmatprep.subr.bf16.mxu0 0
        %1736 = vmatpush1.bf16.msra.mxu0 0
        %1737 = vmatprep.subr.bf16.mxu0 0
        %1738 = vmatpush1.bf16.msra.mxu0 0
        %1739 = vmatprep.subr.bf16.mxu0 0
        %1740 = vmatpush1.bf16.msra.mxu0 0
        %1741 = vmatprep.subr.bf16.mxu0 0
        %1742 = vmatpush1.bf16.msra.mxu0 0
        %1743 = vmatprep.subr.bf16.mxu0 0
        %1744 = vmatpush1.bf16.msra.mxu0 0
        %1745 = vmatprep.subr.bf16.mxu0 0
        %1746 = vmatpush1.bf16.msra.mxu0 0
        %1747 = vmatprep.subr.bf16.mxu0 0
        %1748 = vmatpush1.bf16.msra.mxu0 0
        %1749 = vmatprep.subr.bf16.mxu0 0
        %1750 = vmatpush1.bf16.msra.mxu0 0
        %1751 = vmatprep.mubr.bf16.mxu0 0
        %1752 = vmatmul.mubr.bf16.gmra.mrb[0].mxu0 %v1714
        %v1753 = vpop.f32.mrb[0].mxu0
        %v1754 = vadd.f32 0.0, %v1753
        %v1755 = vpop.f32.mrb[0].mxu0
        %v1756 = vpop.f32.mrb[0].mxu0
        %v1757 = vpop.f32.mrb[0].mxu0
        %1758 = vdwg.mxu0
        %1759 = vrot.lane.b32.xlu0 %v1085, 92
        %v1760 = vpop.permute.xlu0 %1759
        %1761 = vrot.lane.b32.xlu0 %v1085, 44
        %v1762 = vpop.permute.xlu0 %1761
        %v1764 = vsel %vm1090, %v1760, 0
        %v1767 = vsel %vm1090, %v1762, 0
        %1769 = vmatprep.subr.bf16.mxu0 0
        %1770 = vmatpush1.bf16.xpose.msra.mxu0 %v1767
        %1771 = vmatprep.subr.bf16.mxu0 0
        %1772 = vmatpush1.bf16.xpose.msra.mxu0 0
        %1773 = vmatprep.subr.bf16.mxu0 0
        %1774 = vmatpush1.bf16.xpose.msra.mxu0 0
        %1775 = vmatprep.subr.bf16.mxu0 0
        %1776 = vmatpush1.bf16.xpose.msra.mxu0 0
        %1777 = vmatprep.subr.bf16.mxu0 0
        %1778 = vmatpush1.bf16.xpose.msra.mxu0 0
        %1779 = vmatprep.subr.bf16.mxu0 0
        %1780 = vmatpush1.bf16.xpose.msra.mxu0 0
        %1781 = vmatprep.subr.bf16.mxu0 0
        %1782 = vmatpush1.bf16.xpose.msra.mxu0 0
        %1783 = vmatprep.subr.bf16.mxu0 0
        %1784 = vmatpush1.bf16.xpose.msra.mxu0 0
        %1785 = vmatprep.subr.bf16.mxu0 0
        %1786 = vmatpush1.bf16.xpose.msra.mxu0 0
        %1787 = vmatprep.subr.bf16.mxu0 0
        %1788 = vmatpush1.bf16.xpose.msra.mxu0 0
        %1789 = vmatprep.subr.bf16.mxu0 0
        %1790 = vmatpush1.bf16.xpose.msra.mxu0 0
        %1791 = vmatprep.subr.bf16.mxu0 0
        %1792 = vmatpush1.bf16.xpose.msra.mxu0 0
        %1793 = vmatprep.subr.bf16.mxu0 0
        %1794 = vmatpush1.bf16.xpose.msra.mxu0 0
        %1795 = vmatprep.subr.bf16.mxu0 0
        %1796 = vmatpush1.bf16.xpose.msra.mxu0 0
        %1797 = vmatprep.subr.bf16.mxu0 0
        %1798 = vmatpush1.bf16.xpose.msra.mxu0 0
        %1799 = vmatprep.subr.bf16.mxu0 0
        %1800 = vmatpush1.bf16.xpose.msra.mxu0 0
        %1801 = vmatprep.mubr.bf16.mxu0 0
        %1802 = vmatmul.mubr.bf16.gmra.mrb[0].mxu0 %v1764
        %v1803 = vpop.f32.mrb[0].mxu0
        %v1804 = vadd.f32 %v983, %v1803
        %v1805 = vpop.f32.mrb[0].mxu0
        %v1806 = vpop.f32.mrb[0].mxu0
        %v1807 = vpop.f32.mrb[0].mxu0
        %1808 = vdwg.mxu0
        %1809 = vrot.lane.b32.xlu0 %v1086, 92
        %v1810 = vpop.permute.xlu0 %1809
        %1811 = vrot.lane.b32.xlu0 %v1086, 44
        %v1812 = vpop.permute.xlu0 %1811
        %v1814 = vsel %vm1090, %v1810, 0
        %v1817 = vsel %vm1090, %v1812, 0
        %1819 = vmatprep.subr.bf16.mxu0 0
        %1820 = vmatpush1.bf16.xpose.msra.mxu0 %v1817
        %1821 = vmatprep.subr.bf16.mxu0 0
        %1822 = vmatpush1.bf16.xpose.msra.mxu0 0
        %1823 = vmatprep.subr.bf16.mxu0 0
        %1824 = vmatpush1.bf16.xpose.msra.mxu0 0
        %1825 = vmatprep.subr.bf16.mxu0 0
        %1826 = vmatpush1.bf16.xpose.msra.mxu0 0
        %1827 = vmatprep.subr.bf16.mxu0 0
        %1828 = vmatpush1.bf16.xpose.msra.mxu0 0
        %1829 = vmatprep.subr.bf16.mxu0 0
        %1830 = vmatpush1.bf16.xpose.msra.mxu0 0
        %1831 = vmatprep.subr.bf16.mxu0 0
        %1832 = vmatpush1.bf16.xpose.msra.mxu0 0
        %1833 = vmatprep.subr.bf16.mxu0 0
        %1834 = vmatpush1.bf16.xpose.msra.mxu0 0
        %1835 = vmatprep.subr.bf16.mxu0 0
        %1836 = vmatpush1.bf16.xpose.msra.mxu0 0
        %1837 = vmatprep.subr.bf16.mxu0 0
        %1838 = vmatpush1.bf16.xpose.msra.mxu0 0
        %1839 = vmatprep.subr.bf16.mxu0 0
        %1840 = vmatpush1.bf16.xpose.msra.mxu0 0
        %1841 = vmatprep.subr.bf16.mxu0 0
        %1842 = vmatpush1.bf16.xpose.msra.mxu0 0
        %1843 = vmatprep.subr.bf16.mxu0 0
        %1844 = vmatpush1.bf16.xpose.msra.mxu0 0
        %1845 = vmatprep.subr.bf16.mxu0 0
        %1846 = vmatpush1.bf16.xpose.msra.mxu0 0
        %1847 = vmatprep.subr.bf16.mxu0 0
        %1848 = vmatpush1.bf16.xpose.msra.mxu0 0
        %1849 = vmatprep.subr.bf16.mxu0 0
        %1850 = vmatpush1.bf16.xpose.msra.mxu0 0
        %1851 = vmatprep.mubr.bf16.mxu0 0
        %1852 = vmatmul.mubr.bf16.gmra.mrb[0].mxu0 %v1814
        %v1853 = vpop.f32.mrb[0].mxu0
        %v1854 = vadd.f32 %v987, %v1853
        %v1855 = vpop.f32.mrb[0].mxu0
        %v1856 = vpop.f32.mrb[0].mxu0
        %v1857 = vpop.f32.mrb[0].mxu0
        %1858 = vdwg.mxu0
        %v1859 = vsel %vm1186, %v1804, -inf
        %1860 = vmax.xlane.f32.xlu0 %v1859
        %v1861 = vpop.xlane.xlu0 %1860
        %v1862 = vsel %vm1186, %v1854, -inf
        %1863 = vmax.xlane.f32.xlu0 %v1862
        %v1864 = vpop.xlane.xlu0 %1863
        %v1865 = vsub.f32 %v1804, %v1861
        %v1866 = vsub.f32 %v1854, %v1864
        %v1867 = vmul.f32 %v1865, 1.442695
        %v1868 = vpow.pop %v1867
        %v1869 = vmul.f32 %v1866, 1.442695
        %v1870 = vpow.pop %v1869
        %v1871 = vsel %vm1186, %v1868, 0.0
        %1872 = vadd.xlane.f32.xlu0 %v1871
        %v1873 = vpop.xlane.xlu0 %1872
        %v1874 = vsel %vm1186, %v1870, 0.0
        %1875 = vadd.xlane.f32.xlu0 %v1874
        %v1876 = vpop.xlane.xlu0 %1875
        %v1877 = vrcp.pop %v1873
        %v1878 = vrcp.pop %v1876
        %v1879 = vmul.f32 %v1868, %v1877
        %v1880 = vmul.f32 %v1870, %v1878
        %v1881 = vpack.c.bf16 %v1879, %v1879
        %v1882 = vpack.c.bf16 %v1880, %v1880
        %1883 = vrot.lane.b32.xlu0 %v1528, 124
        %v1884 = vpop.permute.xlu0 %1883
        %v1886 = vsel %vm1186, %v1881, 0
        %v1889 = vsel %vm1216, %v1884, 0
        %1891 = vmatprep.subr.bf16.mxu0 0
        %1892 = vmatpush1.bf16.msra.mxu0 %v1889
        %1893 = vmatprep.subr.bf16.mxu0 0
        %1894 = vmatpush1.bf16.msra.mxu0 0
        %1895 = vmatprep.subr.bf16.mxu0 0
        %1896 = vmatpush1.bf16.msra.mxu0 0
        %1897 = vmatprep.subr.bf16.mxu0 0
        %1898 = vmatpush1.bf16.msra.mxu0 0
        %1899 = vmatprep.subr.bf16.mxu0 0
        %1900 = vmatpush1.bf16.msra.mxu0 0
        %1901 = vmatprep.subr.bf16.mxu0 0
        %1902 = vmatpush1.bf16.msra.mxu0 0
        %1903 = vmatprep.subr.bf16.mxu0 0
        %1904 = vmatpush1.bf16.msra.mxu0 0
        %1905 = vmatprep.subr.bf16.mxu0 0
        %1906 = vmatpush1.bf16.msra.mxu0 0
        %1907 = vmatprep.subr.bf16.mxu0 0
        %1908 = vmatpush1.bf16.msra.mxu0 0
        %1909 = vmatprep.subr.bf16.mxu0 0
        %1910 = vmatpush1.bf16.msra.mxu0 0
        %1911 = vmatprep.subr.bf16.mxu0 0
        %1912 = vmatpush1.bf16.msra.mxu0 0
        %1913 = vmatprep.subr.bf16.mxu0 0
        %1914 = vmatpush1.bf16.msra.mxu0 0
        %1915 = vmatprep.subr.bf16.mxu0 0
        %1916 = vmatpush1.bf16.msra.mxu0 0
        %1917 = vmatprep.subr.bf16.mxu0 0
        %1918 = vmatpush1.bf16.msra.mxu0 0
        %1919 = vmatprep.subr.bf16.mxu0 0
        %1920 = vmatpush1.bf16.msra.mxu0 0
        %1921 = vmatprep.subr.bf16.mxu0 0
        %1922 = vmatpush1.bf16.msra.mxu0 0
        %1923 = vmatprep.mubr.bf16.mxu0 0
        %1924 = vmatmul.mubr.bf16.gmra.mrb[0].mxu0 %v1886
        %v1925 = vpop.f32.mrb[0].mxu0
        %v1926 = vadd.f32 0.0, %v1925
        %v1927 = vpop.f32.mrb[0].mxu0
        %v1928 = vpop.f32.mrb[0].mxu0
        %v1929 = vpop.f32.mrb[0].mxu0
        %1930 = vdwg.mxu0
        %1931 = vrot.lane.b32.xlu0 %v1529, 124
        %v1932 = vpop.permute.xlu0 %1931
        %v1934 = vsel %vm1186, %v1882, 0
        %v1937 = vsel %vm1216, %v1932, 0
        %1939 = vmatprep.subr.bf16.mxu0 0
        %1940 = vmatpush1.bf16.msra.mxu0 %v1937
        %1941 = vmatprep.subr.bf16.mxu0 0
        %1942 = vmatpush1.bf16.msra.mxu0 0
        %1943 = vmatprep.subr.bf16.mxu0 0
        %1944 = vmatpush1.bf16.msra.mxu0 0
        %1945 = vmatprep.subr.bf16.mxu0 0
        %1946 = vmatpush1.bf16.msra.mxu0 0
        %1947 = vmatprep.subr.bf16.mxu0 0
        %1948 = vmatpush1.bf16.msra.mxu0 0
        %1949 = vmatprep.subr.bf16.mxu0 0
        %1950 = vmatpush1.bf16.msra.mxu0 0
        %1951 = vmatprep.subr.bf16.mxu0 0
        %1952 = vmatpush1.bf16.msra.mxu0 0
        %1953 = vmatprep.subr.bf16.mxu0 0
        %1954 = vmatpush1.bf16.msra.mxu0 0
        %1955 = vmatprep.subr.bf16.mxu0 0
        %1956 = vmatpush1.bf16.msra.mxu0 0
        %1957 = vmatprep.subr.bf16.mxu0 0
        %1958 = vmatpush1.bf16.msra.mxu0 0
        %1959 = vmatprep.subr.bf16.mxu0 0
        %1960 = vmatpush1.bf16.msra.mxu0 0
        %1961 = vmatprep.subr.bf16.mxu0 0
        %1962 = vmatpush1.bf16.msra.mxu0 0
        %1963 = vmatprep.subr.bf16.mxu0 0
        %1964 = vmatpush1.bf16.msra.mxu0 0
        %1965 = vmatprep.subr.bf16.mxu0 0
        %1966 = vmatpush1.bf16.msra.mxu0 0
        %1967 = vmatprep.subr.bf16.mxu0 0
        %1968 = vmatpush1.bf16.msra.mxu0 0
        %1969 = vmatprep.subr.bf16.mxu0 0
        %1970 = vmatpush1.bf16.msra.mxu0 0
        %1971 = vmatprep.mubr.bf16.mxu0 0
        %1972 = vmatmul.mubr.bf16.gmra.mrb[0].mxu0 %v1934
        %v1973 = vpop.f32.mrb[0].mxu0
        %v1974 = vadd.f32 0.0, %v1973
        %v1975 = vpop.f32.mrb[0].mxu0
        %v1976 = vpop.f32.mrb[0].mxu0
        %v1977 = vpop.f32.mrb[0].mxu0
        %1978 = vdwg.mxu0
        %1981 = vrot.lane.b32.xlu0 %v1475, 12
        %v1982 = vpop.permute.xlu0 %1981
        %1983 = vrot.lane.b32.xlu0 %v1523, 12
        %v1984 = vpop.permute.xlu0 %1983
        %1989 = vrot.lane.b32.xlu0 %v1702, 24
        %v1990 = vpop.permute.xlu0 %1989
        %1991 = vrot.lane.b32.xlu0 %v1754, 24
        %v1992 = vpop.permute.xlu0 %1991
        %1997 = vrot.lane.b32.xlu0 %v1926, 36
        %v1998 = vpop.permute.xlu0 %1997
        %1999 = vrot.lane.b32.xlu0 %v1974, 36
        %v2000 = vpop.permute.xlu0 %1999
        %v2003 = vsel %vm1090, %v1255, %v1982
        %v2004 = vsel %vm1090, %v1303, %v1984
        %vm2005 = vcmask 195584
        %v2006 = vsel %vm2005, %v2003, %v1990
        %v2007 = vsel %vm2005, %v2004, %v1992
        %vm2008 = vcmask 293888
        %v2009 = vsel %vm2008, %v2006, %v1998
        %v2010 = vsel %vm2008, %v2007, %v2000
        %v2011 = vpack.c.bf16 %v2010, %v2009
        %v2012 = vld [vmem:[%s792] sm:$0xf]
        %v2013 = vld [vmem:[%s792 + $0x4] sm:$0xf]
        %v2014 = vld [vmem:[%s792 + $0x8] sm:$0xf]
        %v2015 = vld [vmem:[%s792 + $0xc] sm:$0xf]
        %v2016 = vld [vmem:[%s792 + $0x10] sm:$0xf]
        %v2017 = vld [vmem:[%s792 + $0x14] sm:$0xf]
        %v2018 = vld [vmem:[%s795] sm:$0x1]
        %v2020 = vlaneseq
        %v2021 = vshrl.u32 %v2020, 7
        %v2022 = vsub.s32 0, %v2021
        %v2023 = vrot.slane %v2018, %v2022
        %v2031 = vunpack.c.l.b16 %v2012
        %v2032 = vunpack.c.l.b16 %v2013
        %v2033 = vunpack.c.l.b16 %v2014
        %v2034 = vunpack.c.l.b16 %v2015
        %v2035 = vunpack.c.l.b16 %v2016
        %v2036 = vunpack.c.l.b16 %v2017
        %v2037 = vpack.c.b16 %v2032, %v2031
        %v2038 = vpack.c.b16 %v2034, %v2033
        %v2039 = vpack.c.b16 %v2036, %v2035
        %v2044 = vsel %vm1038, %v2011, 0
        %2046 = vmatprep.subr.bf16.mxu0 0
        %2047 = vmatpush1.bf16.msra.mxu0 %v2037
        %2048 = vmatprep.subr.bf16.mxu0 0
        %2049 = vmatpush1.bf16.msra.mxu0 %v2038
        %2050 = vmatprep.subr.bf16.mxu0 0
        %2051 = vmatpush1.bf16.msra.mxu0 %v2039
        %2052 = vmatprep.subr.bf16.mxu0 0
        %2053 = vmatpush1.bf16.msra.mxu0 0
        %2054 = vmatprep.subr.bf16.mxu0 0
        %2055 = vmatpush1.bf16.msra.mxu0 0
        %2056 = vmatprep.subr.bf16.mxu0 0
        %2057 = vmatpush1.bf16.msra.mxu0 0
        %2058 = vmatprep.subr.bf16.mxu0 0
        %2059 = vmatpush1.bf16.msra.mxu0 0
        %2060 = vmatprep.subr.bf16.mxu0 0
        %2061 = vmatpush1.bf16.msra.mxu0 0
        %2062 = vmatprep.subr.bf16.mxu0 0
        %2063 = vmatpush1.bf16.msra.mxu0 0
        %2064 = vmatprep.subr.bf16.mxu0 0
        %2065 = vmatpush1.bf16.msra.mxu0 0
        %2066 = vmatprep.subr.bf16.mxu0 0
        %2067 = vmatpush1.bf16.msra.mxu0 0
        %2068 = vmatprep.subr.bf16.mxu0 0
        %2069 = vmatpush1.bf16.msra.mxu0 0
        %2070 = vmatprep.subr.bf16.mxu0 0
        %2071 = vmatpush1.bf16.msra.mxu0 0
        %2072 = vmatprep.subr.bf16.mxu0 0
        %2073 = vmatpush1.bf16.msra.mxu0 0
        %2074 = vmatprep.subr.bf16.mxu0 0
        %2075 = vmatpush1.bf16.msra.mxu0 0
        %2076 = vmatprep.subr.bf16.mxu0 0
        %2077 = vmatpush1.bf16.msra.mxu0 0
        %2078 = vmatprep.mubr.bf16.mxu0 0
        %2079 = vmatmul.mubr.bf16.gmra.mrb[0].mxu0 %v2044
        %v2080 = vpop.f32.mrb[0].mxu0
        %v2081 = vadd.f32 %v2023, %v2080
        %v2082 = vpop.f32.mrb[0].mxu0
        %v2083 = vpop.f32.mrb[0].mxu0
        %v2084 = vadd.f32 %v2023, %v2083
        %v2085 = vpop.f32.mrb[0].mxu0
        %2086 = vdwg.mxu0
        %v2087 = vadd.f32 %v973, %v2081
        %v2088 = vadd.f32 %v974, %v2084
        %v2089 = vld [vmem:[%s798] sm:$0x1]
        %v2090 = vld [vmem:[%s801] sm:$0x1]
        %v2091 = vsel %vm1038, %v2087, 0.0
        %2092 = vadd.xlane.f32.xlu0 %v2091
        %v2093 = vpop.xlane.xlu0 %2092
        %v2094 = vsel %vm1038, %v2088, 0.0
        %2095 = vadd.xlane.f32.xlu0 %v2094
        %v2096 = vpop.xlane.xlu0 %2095
        %v2097 = vrcp.pop 48.0
        %v2098 = vmul.f32 %v2093, %v2097
        %v2099 = vmul.f32 %v2096, %v2097
        %v2100 = vsub.f32 %v2087, %v2098
        %v2101 = vsub.f32 %v2088, %v2099
        %v2102 = vmul.f32 %v2100, %v2100
        %v2103 = vmul.f32 %v2101, %v2101
        %v2104 = vsel %vm1038, %v2102, 0.0
        %2105 = vadd.xlane.f32.xlu0 %v2104
        %v2106 = vpop.xlane.xlu0 %2105
        %v2107 = vsel %vm1038, %v2103, 0.0
        %2108 = vadd.xlane.f32.xlu0 %v2107
        %v2109 = vpop.xlane.xlu0 %2108
        %v2110 = vmul.f32 %v2106, %v2097
        %v2111 = vmul.f32 %v2109, %v2097
        %v2112 = vadd.f32 %v2110, 1e-12
        %v2113 = vadd.f32 %v2111, 1e-12
        %v2114 = vrsqrt.pop %v2112
        %v2115 = vrsqrt.pop %v2113
        %v2116 = vmul.f32 %v2100, %v2114
        %v2117 = vmul.f32 %v2101, %v2115
        %v2119 = vlaneseq
        %v2120 = vshrl.u32 %v2119, 7
        %v2121 = vsub.s32 0, %v2120
        %v2122 = vrot.slane %v2089, %v2121
        %v2124 = vmul.f32 %v2116, %v2122
        %v2125 = vmul.f32 %v2117, %v2122
        %v2127 = vlaneseq
        %v2128 = vshrl.u32 %v2127, 7
        %v2129 = vsub.s32 0, %v2128
        %v2130 = vrot.slane %v2090, %v2129
        %v2132 = vadd.f32 %v2124, %v2130
        %v2133 = vadd.f32 %v2125, %v2130
        %v2134 = vpack.c.bf16 %v2133, %v2132
        %v2135 = vld [vmem:[%s806] sm:$0xff]
        %v2136 = vld [vmem:[%s806 + $0x8] sm:$0xff]
        %v2137 = vld [vmem:[%s806 + $0x10] sm:$0xff]
        %v2138 = vld [vmem:[%s806 + $0x18] sm:$0xff]
        %v2139 = vld [vmem:[%s806 + $0x20] sm:$0xff]
        %v2140 = vld [vmem:[%s806 + $0x28] sm:$0xff]
        %v2141 = vld [vmem:[%s810] sm:$0x3]
        %v2143 = vlaneseq
        %v2144 = vshrl.u32 %v2143, 7
        %v2145 = vsub.s32 0, %v2144
        %v2146 = vrot.slane %v2141, %v2145
        %v2147 = vlaneseq
        %v2148 = vshrl.u32 %v2147, 7
        %v2149 = vsub.s32 1, %v2148
        %v2150 = vrot.slane %v2141, %v2149
        %v2159 = vunpack.c.l.b16 %v2135
        %v2160 = vunpack.c.h.b16 %v2135
        %v2161 = vunpack.c.l.b16 %v2136
        %v2162 = vunpack.c.h.b16 %v2136
        %v2163 = vunpack.c.l.b16 %v2137
        %v2164 = vunpack.c.h.b16 %v2137
        %v2165 = vunpack.c.l.b16 %v2138
        %v2166 = vunpack.c.h.b16 %v2138
        %v2167 = vunpack.c.l.b16 %v2139
        %v2168 = vunpack.c.h.b16 %v2139
        %v2169 = vunpack.c.l.b16 %v2140
        %v2170 = vunpack.c.h.b16 %v2140
        %v2171 = vpack.c.b16 %v2161, %v2159
        %v2172 = vpack.c.b16 %v2162, %v2160
        %v2173 = vpack.c.b16 %v2165, %v2163
        %v2174 = vpack.c.b16 %v2166, %v2164
        %v2175 = vpack.c.b16 %v2169, %v2167
        %v2176 = vpack.c.b16 %v2170, %v2168
        %v2184 = vsel %vm1038, %v2134, 0
        %2186 = vmatprep.subr.bf16.mxu0 %v2172
        %2187 = vmatpush1.bf16.msra.mxu0 %v2171
        %2188 = vmatprep.subr.bf16.mxu0 %v2174
        %2189 = vmatpush1.bf16.msra.mxu0 %v2173
        %2190 = vmatprep.subr.bf16.mxu0 %v2176
        %2191 = vmatpush1.bf16.msra.mxu0 %v2175
        %2192 = vmatprep.subr.bf16.mxu0 0
        %2193 = vmatpush1.bf16.msra.mxu0 0
        %2194 = vmatprep.subr.bf16.mxu0 0
        %2195 = vmatpush1.bf16.msra.mxu0 0
        %2196 = vmatprep.subr.bf16.mxu0 0
        %2197 = vmatpush1.bf16.msra.mxu0 0
        %2198 = vmatprep.subr.bf16.mxu0 0
        %2199 = vmatpush1.bf16.msra.mxu0 0
        %2200 = vmatprep.subr.bf16.mxu0 0
        %2201 = vmatpush1.bf16.msra.mxu0 0
        %2202 = vmatprep.subr.bf16.mxu0 0
        %2203 = vmatpush1.bf16.msra.mxu0 0
        %2204 = vmatprep.subr.bf16.mxu0 0
        %2205 = vmatpush1.bf16.msra.mxu0 0
        %2206 = vmatprep.subr.bf16.mxu0 0
        %2207 = vmatpush1.bf16.msra.mxu0 0
        %2208 = vmatprep.subr.bf16.mxu0 0
        %2209 = vmatpush1.bf16.msra.mxu0 0
        %2210 = vmatprep.subr.bf16.mxu0 0
        %2211 = vmatpush1.bf16.msra.mxu0 0
        %2212 = vmatprep.subr.bf16.mxu0 0
        %2213 = vmatpush1.bf16.msra.mxu0 0
        %2214 = vmatprep.subr.bf16.mxu0 0
        %2215 = vmatpush1.bf16.msra.mxu0 0
        %2216 = vmatprep.subr.bf16.mxu0 0
        %2217 = vmatpush1.bf16.msra.mxu0 0
        %2218 = vmatprep.mubr.bf16.mxu0 0
        %2219 = vmatmul.mubr.bf16.gmra.mrb[0].mxu0 %v2184
        %v2220 = vpop.f32.mrb[0].mxu0
        %v2221 = vadd.f32 %v2146, %v2220
        %v2222 = vpop.f32.mrb[0].mxu0
        %v2223 = vadd.f32 %v2150, %v2222
        %v2224 = vpop.f32.mrb[0].mxu0
        %v2225 = vadd.f32 %v2146, %v2224
        %v2226 = vpop.f32.mrb[0].mxu0
        %v2227 = vadd.f32 %v2150, %v2226
        %2228 = vdwg.mxu0
        %v2229 = vmul.f32 %v2221, 0.5
        %v2230 = vmul.f32 %v2223, 0.5
        %v2231 = vmul.f32 %v2225, 0.5
        %v2232 = vmul.f32 %v2227, 0.5
        %v2233 = vmul.f32 %v2221, 0.044715
        %v2234 = vmul.f32 %v2223, 0.044715
        %v2235 = vmul.f32 %v2225, 0.044715
        %v2236 = vmul.f32 %v2227, 0.044715
        %v2237 = vmul.f32 %v2233, %v2221
        %v2238 = vmul.f32 %v2234, %v2223
        %v2239 = vmul.f32 %v2235, %v2225
        %v2240 = vmul.f32 %v2236, %v2227
        %v2241 = vmul.f32 %v2237, %v2221
        %v2242 = vmul.f32 %v2238, %v2223
        %v2243 = vmul.f32 %v2239, %v2225
        %v2244 = vmul.f32 %v2240, %v2227
        %v2245 = vadd.f32 %v2221, %v2241
        %v2246 = vadd.f32 %v2223, %v2242
        %v2247 = vadd.f32 %v2225, %v2243
        %v2248 = vadd.f32 %v2227, %v2244
        %v2249 = vmul.f32 %v2245, 0.7978846
        %v2250 = vmul.f32 %v2246, 0.7978846
        %v2251 = vmul.f32 %v2247, 0.7978846
        %v2252 = vmul.f32 %v2248, 0.7978846
        %v2253 = vtanh.pop %v2249
        %v2254 = vtanh.pop %v2250
        %v2255 = vtanh.pop %v2251
        %v2256 = vtanh.pop %v2252
        %v2257 = vadd.f32 %v2253, 1.0
        %v2258 = vadd.f32 %v2254, 1.0
        %v2259 = vadd.f32 %v2255, 1.0
        %v2260 = vadd.f32 %v2256, 1.0
        %v2261 = vmul.f32 %v2229, %v2257
        %v2262 = vmul.f32 %v2230, %v2258
        %v2263 = vmul.f32 %v2231, %v2259
        %v2264 = vmul.f32 %v2232, %v2260
        %v2265 = vpack.c.bf16 %v2263, %v2261
        %v2266 = vpack.c.bf16 %v2264, %v2262
        %v2267 = vld [vmem:[%s815] sm:$0xf]
        %v2268 = vld [vmem:[%s815 + $0x4] sm:$0xf]
        %v2269 = vld [vmem:[%s815 + $0x8] sm:$0xf]
        %v2270 = vld [vmem:[%s815 + $0xc] sm:$0xf]
        %v2271 = vld [vmem:[%s815 + $0x10] sm:$0xf]
        %v2272 = vld [vmem:[%s815 + $0x14] sm:$0xf]
        %v2273 = vld [vmem:[%s815 + $0x18] sm:$0xf]
        %v2274 = vld [vmem:[%s815 + $0x1c] sm:$0xf]
        %v2275 = vld [vmem:[%s815 + $0x20] sm:$0xf]
        %v2276 = vld [vmem:[%s815 + $0x24] sm:$0xf]
        %v2277 = vld [vmem:[%s815 + $0x28] sm:$0xf]
        %v2278 = vld [vmem:[%s815 + $0x2c] sm:$0xf]
        %v2279 = vld [vmem:[%s815 + $0x30] sm:$0xf]
        %v2280 = vld [vmem:[%s815 + $0x34] sm:$0xf]
        %v2281 = vld [vmem:[%s815 + $0x38] sm:$0xf]
        %v2282 = vld [vmem:[%s815 + $0x3c] sm:$0xf]
        %v2283 = vld [vmem:[%s815 + $0x40] sm:$0xf]
        %v2284 = vld [vmem:[%s815 + $0x44] sm:$0xf]
        %v2285 = vld [vmem:[%s815 + $0x48] sm:$0xf]
        %v2286 = vld [vmem:[%s815 + $0x4c] sm:$0xf]
        %v2287 = vld [vmem:[%s815 + $0x50] sm:$0xf]
        %v2288 = vld [vmem:[%s815 + $0x54] sm:$0xf]
        %v2289 = vld [vmem:[%s815 + $0x58] sm:$0xf]
        %v2290 = vld [vmem:[%s815 + $0x5c] sm:$0xf]
        %v2291 = vld [vmem:[%s818] sm:$0x1]
        %v2293 = vlaneseq
        %v2294 = vshrl.u32 %v2293, 7
        %v2295 = vsub.s32 0, %v2294
        %v2296 = vrot.slane %v2291, %v2295
        %v2322 = vunpack.c.l.b16 %v2267
        %v2323 = vunpack.c.l.b16 %v2268
        %v2324 = vunpack.c.l.b16 %v2269
        %v2325 = vunpack.c.l.b16 %v2270
        %v2326 = vunpack.c.l.b16 %v2271
        %v2327 = vunpack.c.l.b16 %v2272
        %v2328 = vunpack.c.l.b16 %v2273
        %v2329 = vunpack.c.l.b16 %v2274
        %v2330 = vunpack.c.l.b16 %v2275
        %v2331 = vunpack.c.l.b16 %v2276
        %v2332 = vunpack.c.l.b16 %v2277
        %v2333 = vunpack.c.l.b16 %v2278
        %v2334 = vunpack.c.l.b16 %v2279
        %v2335 = vunpack.c.l.b16 %v2280
        %v2336 = vunpack.c.l.b16 %v2281
        %v2337 = vunpack.c.l.b16 %v2282
        %v2338 = vunpack.c.l.b16 %v2283
        %v2339 = vunpack.c.l.b16 %v2284
        %v2340 = vunpack.c.l.b16 %v2285
        %v2341 = vunpack.c.l.b16 %v2286
        %v2342 = vunpack.c.l.b16 %v2287
        %v2343 = vunpack.c.l.b16 %v2288
        %v2344 = vunpack.c.l.b16 %v2289
        %v2345 = vunpack.c.l.b16 %v2290
        %v2346 = vpack.c.b16 %v2323, %v2322
        %v2347 = vpack.c.b16 %v2325, %v2324
        %v2348 = vpack.c.b16 %v2327, %v2326
        %v2349 = vpack.c.b16 %v2329, %v2328
        %v2350 = vpack.c.b16 %v2331, %v2330
        %v2351 = vpack.c.b16 %v2333, %v2332
        %v2352 = vpack.c.b16 %v2335, %v2334
        %v2353 = vpack.c.b16 %v2337, %v2336
        %v2354 = vpack.c.b16 %v2339, %v2338
        %v2355 = vpack.c.b16 %v2341, %v2340
        %v2356 = vpack.c.b16 %v2343, %v2342
        %v2357 = vpack.c.b16 %v2345, %v2344
        %vm2370 = vcmask 523264
        %v2372 = vsel %vm2370, %v2266, 0
        %2374 = vmatprep.subr.bf16.mxu0 0
        %2375 = vmatpush1.bf16.msra.mxu0 %v2346
        %2376 = vmatprep.subr.bf16.mxu0 0
        %2377 = vmatpush1.bf16.msra.mxu0 %v2347
        %2378 = vmatprep.subr.bf16.mxu0 0
        %2379 = vmatpush1.bf16.msra.mxu0 %v2348
        %2380 = vmatprep.subr.bf16.mxu0 0
        %2381 = vmatpush1.bf16.msra.mxu0 %v2349
        %2382 = vmatprep.subr.bf16.mxu0 0
        %2383 = vmatpush1.bf16.msra.mxu0 %v2350
        %2384 = vmatprep.subr.bf16.mxu0 0
        %2385 = vmatpush1.bf16.msra.mxu0 %v2351
        %2386 = vmatprep.subr.bf16.mxu0 0
        %2387 = vmatpush1.bf16.msra.mxu0 %v2352
        %2388 = vmatprep.subr.bf16.mxu0 0
        %2389 = vmatpush1.bf16.msra.mxu0 %v2353
        %2390 = vmatprep.subr.bf16.mxu0 0
        %2391 = vmatpush1.bf16.msra.mxu0 %v2354
        %2392 = vmatprep.subr.bf16.mxu0 0
        %2393 = vmatpush1.bf16.msra.mxu0 %v2355
        %2394 = vmatprep.subr.bf16.mxu0 0
        %2395 = vmatpush1.bf16.msra.mxu0 %v2356
        %2396 = vmatprep.subr.bf16.mxu0 0
        %2397 = vmatpush1.bf16.msra.mxu0 %v2357
        %2398 = vmatprep.subr.bf16.mxu0 0
        %2399 = vmatpush1.bf16.msra.mxu0 0
        %2400 = vmatprep.subr.bf16.mxu0 0
        %2401 = vmatpush1.bf16.msra.mxu0 0
        %2402 = vmatprep.subr.bf16.mxu0 0
        %2403 = vmatpush1.bf16.msra.mxu0 0
        %2404 = vmatprep.subr.bf16.mxu0 0
        %2405 = vmatpush1.bf16.msra.mxu0 0
        %2406 = vmatprep.mubr.bf16.mxu0 %v2372
        %2407 = vmatmul.mubr.bf16.gmra.mrb[0].mxu0 %v2265
        %v2408 = vpop.f32.mrb[0].mxu0
        %v2409 = vadd.f32 %v2296, %v2408
        %v2410 = vpop.f32.mrb[0].mxu0
        %v2411 = vpop.f32.mrb[0].mxu0
        %v2412 = vadd.f32 %v2296, %v2411
        %v2413 = vpop.f32.mrb[0].mxu0
        %2414 = vdwg.mxu0
        %v2415 = vadd.f32 %v2132, %v2409
        %v2416 = vadd.f32 %v2133, %v2412
        %v2417 = vld [vmem:[%s821] sm:$0x1]
        %v2418 = vld [vmem:[%s824] sm:$0x1]
        %v2419 = vsel %vm1038, %v2415, 0.0
        %2420 = vadd.xlane.f32.xlu0 %v2419
        %v2421 = vpop.xlane.xlu0 %2420
        %v2422 = vsel %vm1038, %v2416, 0.0
        %2423 = vadd.xlane.f32.xlu0 %v2422
        %v2424 = vpop.xlane.xlu0 %2423
        %v2425 = vmul.f32 %v2421, %v2097
        %v2426 = vmul.f32 %v2424, %v2097
        %v2427 = vsub.f32 %v2415, %v2425
        %v2428 = vsub.f32 %v2416, %v2426
        %v2429 = vmul.f32 %v2427, %v2427
        %v2430 = vmul.f32 %v2428, %v2428
        %v2431 = vsel %vm1038, %v2429, 0.0
        %2432 = vadd.xlane.f32.xlu0 %v2431
        %v2433 = vpop.xlane.xlu0 %2432
        %v2434 = vsel %vm1038, %v2430, 0.0
        %2435 = vadd.xlane.f32.xlu0 %v2434
        %v2436 = vpop.xlane.xlu0 %2435
        %v2437 = vmul.f32 %v2433, %v2097
        %v2438 = vmul.f32 %v2436, %v2097
        %v2439 = vadd.f32 %v2437, 1e-12
        %v2440 = vadd.f32 %v2438, 1e-12
        %v2441 = vrsqrt.pop %v2439
        %v2442 = vrsqrt.pop %v2440
        %v2443 = vmul.f32 %v2427, %v2441
        %v2444 = vmul.f32 %v2428, %v2442
        %v2446 = vlaneseq
        %v2447 = vshrl.u32 %v2446, 7
        %v2448 = vsub.s32 0, %v2447
        %v2449 = vrot.slane %v2417, %v2448
        %v2451 = vmul.f32 %v2443, %v2449
        %v2452 = vmul.f32 %v2444, %v2449
        %v2454 = vlaneseq
        %v2455 = vshrl.u32 %v2454, 7
        %v2456 = vsub.s32 0, %v2455
        %v2457 = vrot.slane %v2418, %v2456
        %v2459 = vadd.f32 %v2451, %v2457
        %v2460 = vadd.f32 %v2452, %v2457
        %2461 = vst.msk [vmem:[#allocation2] sm:$0xff] %vm1038, %v2459
        %2462 = vst.msk [vmem:[#allocation2 + $0x8] sm:$0xff] %vm1038, %v2460
        // Predicated region
        $region101: #{tpu_custom_call.1} parent=95 // pred_check
          %p2463 = pneg %p530
        $region102: #{tpu_custom_call.1} parent=95 // pred_check_branch
          %2465 = sbr.rel (%p2463) target = $region104
        $region103: #{tpu_custom_call.1} parent=95 // pred_region
          %s2466 = smul.u32 2, %s35
          %s2468 = ssub.s32 256, 256
          %2469 = vsyncadd [#allocation3], %s2468
          %s2470 = smul.addr %s2466, 128
          %s2471 = scalar_lea.hbm %s19, %s2470
          %s2472 = sshll.u32 [#allocation2], 4
          %s2473 = int_to_ptr.vmem [resolvable:$true] %s2472
          %2478 = dma.vmem_to_hbm [thread:$0]  %s2473, 256, %s2471, [#allocation3], 128, 128, 8
        $region104: #{tpu_custom_call.1} parent=95 // pred_fallthru
          _
        // Predicated region
        $region105: #{tpu_custom_call.1} parent=95 // pred_check
          %p2479 = pneg %p530
        $region106: #{tpu_custom_call.1} parent=95 // pred_check_branch
          %2481 = sbr.rel (%p2479) target = $region108
        $region107: #{tpu_custom_call.1} parent=95 // pred_region
          %2482 = dma.done [#allocation3], 256
        $region108: #{tpu_custom_call.1} parent=95 // pred_fallthru
          _
      $region96: #{tpu_custom_call.1} parent=5 // pred_fallthru
        _
      %p2483 = scmp.le.s32.totalorder 2, %s26
      // Predicated region
      $region109: #{tpu_custom_call.1} parent=5 // pred_check
        %p2484 = pneg %p2483
      $region110: #{tpu_custom_call.1} parent=5 // pred_check_branch
        %2486 = sbr.rel (%p2484) target = $region112
      $region111: #{tpu_custom_call.1} parent=5 // pred_region
        %s2487 = ssub.s32 %s26, 2
      $region112: #{tpu_custom_call.1} parent=5 // pred_fallthru
        _
    $region6: #{tpu_custom_call.1} parent=1 // loop_footer
      %s30 = sadd.s32 1, %s26
    $region7: #{tpu_custom_call.1} parent=1 // loop_footer_branch
      %25 = sbr.rel target = $region3
    $region8: #{tpu_custom_call.1} parent=1 // loop_exit
      _
    %2488 = vsyncpa [#allocation3], 1
    %s2489 = scalar_lea.sflag [#allocation3], 1
    %2490 = vsyncpa %s2489, 1

</llo_original>
